<compile_context>
chip_gen: v5e
topology: v5e:2x2
jax: 0.10.0
libtpu: 0.0.40
codegen_flags: <defaults>
</compile_context>

<pallas_src>
import numpy as np
import jax
import jax.numpy as jnp
from jax.experimental import pallas as pl
from jax.experimental.pallas import tpu as pltpu

EPS = 1e-5
OUT_LANES = 128   # lane-dense output width (column 0 holds the real logit)

# Row indices of the packed (16, 128) f32 constants array.
_SC1, _SH1, _SC2, _SH2, _SC3, _SH3, _SC4, _SH4, _FB1, _FB2, _W1 = range(11)


# ----------------------------- kernel helpers ------------------------------
def _bn_relu(acc_f32, scale, shift):
    """Folded eval-mode BatchNorm (f32 scale/shift on the lane axis) + ReLU."""
    return jnp.maximum(acc_f32 * scale + shift, 0.0)


def _bn_relu_maxpool2(acc_f32, scale, shift, tb):
    """BN + ReLU fused with MaxPool1d(2) over the position axis.

    The reshape only splits the leading (position-block) axis - a free view,
    no sublane regrouping - and the pre-pool activation is never materialized.
    """
    n, c = acc_f32.shape
    a = acc_f32.reshape(n // (2 * tb), 2 * tb, c)
    even = jnp.maximum(a[:, :tb, :] * scale + shift, 0.0)   # positions 2p
    odd = jnp.maximum(a[:, tb:, :] * scale + shift, 0.0)    # positions 2p+1
    return jnp.maximum(even, odd).reshape(n // 2, c)        # f32


def _conv3_from_halo(scr_ref, w_ref, cin, n_rows, tb):
    """k=3 (pad=1) conv as three accumulated MXU dots on tb-row-shifted slices
    of a halo-padded VMEM scratch (the zero halos supply the padding)."""
    acc = jnp.dot(scr_ref[pl.ds(0, n_rows), :], w_ref[pl.ds(0, cin), :],
                  preferred_element_type=jnp.float32)
    for k in (1, 2):
        acc = acc + jnp.dot(scr_ref[pl.ds(k * tb, n_rows), :],
                            w_ref[pl.ds(k * cin, cin), :],
                            preferred_element_type=jnp.float32)
    return acc


# --------------------------------- kernel ----------------------------------
def cnn_kernel(xh_ref, cst_ref, w2_ref, w3_ref, w4_ref, fw1_ref, fw2_ref,
               out_ref, sa_ref, sb_ref, sc_ref):
    seq = xh_ref.shape[0] - 4          # n_features (positions)
    tb = xh_ref.shape[1]               # batch tile
    rows = seq * tb
    rows2 = rows // 2
    seq4 = seq // 4
    cdt = sa_ref.dtype                 # compute dtype (activations / weights)

    cst = cst_ref[...]                 # (16, 128) f32 packed constants

    # Zero the tb-row halos of every scratch (cheap; done every grid step so it
    # also holds under megacore grid partitioning).
    z32 = jnp.zeros((tb, 32), cdt)
    z64 = jnp.zeros((tb, 64), cdt)
    sa_ref[pl.ds(0, tb), :] = z32
    sa_ref[pl.ds(rows + tb, tb), :] = z32
    sb_ref[pl.ds(0, tb), :] = z32
    sb_ref[pl.ds(rows2 + tb, tb), :] = z32
    sc_ref[pl.ds(0, tb), :] = z64
    sc_ref[pl.ds(rows2 + tb, tb), :] = z64

    # ---- conv block 1 ------------------------------------------------------
    # Conv1d(1->32, k=5, pad=2): five shifted VPU broadcast multiply-adds on
    # the compact halo'd (seq+4, tb) input (no K=5 MXU matmul, no (rows,5) slab).
    x3 = xh_ref[...].astype(jnp.float32)[:, :, None]          # (seq+4, tb, 1)
    w1 = cst[_W1:_W1 + 5, :32]                                 # (5, 32)
    acc = x3[0:seq] * w1[0]
    for k in range(1, 5):
        acc = acc + x3[k:k + seq] * w1[k]                      # (seq, tb, 32) f32
    h1 = _bn_relu(acc, cst[_SC1, :32], cst[_SH1, :32])
    sa_ref[pl.ds(tb, rows), :] = h1.reshape(rows, 32).astype(cdt)

    # Conv1d(32->32, k=3) -> BN -> ReLU -> MaxPool(2) from halo scratch A.
    acc = _conv3_from_halo(sa_ref, w2_ref, 32, rows, tb)
    p1 = _bn_relu_maxpool2(acc, cst[_SC2, :32], cst[_SH2, :32], tb)
    sb_ref[pl.ds(tb, rows2), :] = p1.astype(cdt)

    # ---- conv block 2 ------------------------------------------------------
    acc = _conv3_from_halo(sb_ref, w3_ref, 32, rows2, tb)      # 32 -> 64
    h3 = _bn_relu(acc, cst[_SC3, :64], cst[_SH3, :64])
    sc_ref[pl.ds(tb, rows2), :] = h3.astype(cdt)

    acc = _conv3_from_halo(sc_ref, w4_ref, 64, rows2, tb)      # 64 -> 64
    p2 = _bn_relu_maxpool2(acc, cst[_SC4, :64], cst[_SH4, :64], tb)  # (rows//4, 64)

    # ---- AdaptiveAvgPool1d(1): reshape + axis-0 sum (tree reduction) --------
    g = p2.reshape(seq4, tb, 64).sum(axis=0) * (1.0 / seq4)    # (tb, 64) f32

    # ---- fc head: Linear(64,32) -> ReLU -> Linear(32,1) padded to 128 lanes -
    z = jnp.dot(g.astype(cdt), fw1_ref[...], preferred_element_type=jnp.float32)
    z = jnp.maximum(z + cst[_FB1, :32], 0.0)
    out = jnp.dot(z.astype(cdt), fw2_ref[...], preferred_element_type=jnp.float32)
    out_ref[...] = (out + cst[_FB2, :]).astype(out_ref.dtype)
    # TODO(synk): Dropout / Dropout1d are stochastic train-time ops; identity here.


# ------------------------------ host helpers -------------------------------
def _bn_fold(conv_b, bn):
    gamma, beta, mean, var = bn
    scale = gamma / jnp.sqrt(var + EPS)
    shift = beta + scale * (conv_b - mean)
    return scale.astype(jnp.float32), shift.astype(jnp.float32)


def _w_col(conv_w, dtype):
    """(Cout, Cin, K) conv weight -> (K*Cin, Cout), rows ordered (k, cin)."""
    cout, cin, k = conv_w.shape
    return jnp.transpose(conv_w, (2, 1, 0)).reshape(k * cin, cout).astype(dtype)


def _vmem_capacity_bytes():
    try:
        return int(pltpu.get_tpu_info().vmem_capacity_bytes)
    except Exception:
        pass
    try:
        kind = jax.devices()[0].device_kind.lower()
    except Exception:
        kind = ""
    if "v7" in kind:
        return 64 * 2 ** 20
    if "v2" in kind or "v3" in kind:
        return 16 * 2 ** 20
    return 128 * 2 ** 20


def _default_compute_dtype():
    """bf16 on v6e/v7x (doubles MXU rate, halves activation VMEM); f32 else."""
    try:
        kind = jax.devices()[0].device_kind.lower()
    except Exception:
        return jnp.float32
    return jnp.bfloat16 if ("v6" in kind or "v7" in kind) else jnp.float32


def _vmem_estimate(tb, seq, itemsize):
    """Rough per-tile VMEM footprint (bytes): pipelined blocks + halo scratch +
    f32 accumulators.  Last dims pad to 128 lanes in VMEM."""
    rows, rows2 = seq * tb, seq * tb // 2
    lane_b = 128 * itemsize
    blocks = 2 * (seq + 12) * 128 * itemsize + 2 * max(tb, 8) * 128 * 4
    weights = 2 * (32 * 1024 * itemsize + 8 * 1024)
    scratch = ((rows + 2 * tb) + 2 * (rows2 + 2 * tb)) * lane_b
    transient = 3 * rows * 128 * 4
    return blocks + weights + scratch + transient


def _choose_batch_tile(b, seq, itemsize, budget):
    """Largest batch tile that (a) keeps sublane slices aligned (x16 for bf16),
    (b) leaves >= 2 grid steps when the batch allows it (both v7x TensorCores
    get work; near-free on single-core chips), (c) fits the VMEM budget."""
    align = 16 if itemsize == 2 else 8
    if b < align:
        return b                                  # tiny batch: one unaligned tile
    tb = min(128, (b // align) * align)
    if b >= 2 * align:
        tb = min(tb, max(align, ((b // 2) // align) * align))
    while tb > align and _vmem_estimate(tb, seq, itemsize) > budget:
        tb -= align
    for cand in range(tb, max(align, tb // 2) - 1, -align):
        if b % cand == 0:                         # prefer exact divisor: no padding
            return cand
    return tb


# ------------------------------ host wrapper --------------------------------
def regularized_improved_cnn_pallas(x, params, compute_dtype=None):
    """x: (B, n_features) float32 -> (B, 1) float32 (eval-mode forward)."""
    b, seq = x.shape
    assert seq % 4 == 0, "n_features must be divisible by 4 (two MaxPool(2))"
    cdt = _default_compute_dtype() if compute_dtype is None else compute_dtype
    itemsize = jnp.dtype(cdt).itemsize

    cap = _vmem_capacity_bytes()
    tb = _choose_batch_tile(b, seq, itemsize, budget=int(0.55 * cap))
    b_pad = -(-b // tb) * tb
    nt = b_pad // tb
    rows, rows2 = seq * tb, seq * tb // 2

    # ---- fold conv bias + eval-mode BatchNorm; pack the small constants -----
    sc1, sh1 = _bn_fold(params["c11_b"], params["bn11"])
    sc2, sh2 = _bn_fold(params["c12_b"], params["bn12"])
    sc3, sh3 = _bn_fold(params["c21_b"], params["bn21"])
    sc4, sh4 = _bn_fold(params["c22_b"], params["bn22"])
    w1_taps = jnp.transpose(params["c11_w"][:, 0, :]).astype(jnp.float32)  # (5, 32)

    cst = jnp.zeros((16, 128), jnp.float32)
    cst = cst.at[_SC1, :32].set(sc1).at[_SH1, :32].set(sh1)
    cst = cst.at[_SC2, :32].set(sc2).at[_SH2, :32].set(sh2)
    cst = cst.at[_SC3, :64].set(sc3).at[_SH3, :64].set(sh3)
    cst = cst.at[_SC4, :64].set(sc4).at[_SH4, :64].set(sh4)
    cst = cst.at[_FB1, :32].set(params["fc1_b"].astype(jnp.float32))
    cst = cst.at[_FB2, 0].set(params["fc2_b"][0].astype(jnp.float32))
    cst = cst.at[_W1:_W1 + 5, :32].set(w1_taps)

    w2 = _w_col(params["c12_w"], cdt)                                  # (96, 32)
    w3 = _w_col(params["c21_w"], cdt)                                  # (96, 64)
    w4 = _w_col(params["c22_w"], cdt)                                  # (192, 64)
    fw1 = jnp.transpose(params["fc1_w"]).astype(cdt)                   # (64, 32)
    fw2 = jnp.zeros((32, OUT_LANES), cdt).at[:, 0].set(
        params["fc2_w"][0].astype(cdt))                                # (32, 128)

    # ---- compact halo'd per-tile input: xh[i, 2 + l, bl] = x[i*tb + bl, l] --
    if b_pad != b:
        x = jnp.pad(x, ((0, b_pad - b), (0, 0)))
    xh = jnp.transpose(x.reshape(nt, tb, seq), (0, 2, 1))              # (nt, seq, tb)
    xh = jnp.pad(xh, ((0, 0), (2, 2), (0, 0))).astype(cdt)             # (nt, seq+4, tb)

    args = (xh, cst, w2, w3, w4, fw1, fw2)
    in_specs = [
        pl.BlockSpec((pl.Squeezed(), seq + 4, tb), lambda i: (i, 0, 0)),
        pl.BlockSpec(cst.shape, lambda i: (0, 0)),
        pl.BlockSpec(w2.shape, lambda i: (0, 0)),
        pl.BlockSpec(w3.shape, lambda i: (0, 0)),
        pl.BlockSpec(w4.shape, lambda i: (0, 0)),
        pl.BlockSpec(fw1.shape, lambda i: (0, 0)),
        pl.BlockSpec(fw2.shape, lambda i: (0, 0)),
    ]
    out_specs = pl.BlockSpec((tb, OUT_LANES), lambda i: (i, 0))

    scratch_shapes = [
        pltpu.VMEM((rows + 2 * tb, 32), cdt),    # conv2 input (h1)   + halos
        pltpu.VMEM((rows2 + 2 * tb, 32), cdt),   # conv3 input (pool) + halos
        pltpu.VMEM((rows2 + 2 * tb, 64), cdt),   # conv4 input (h3)   + halos
    ]

    est = _vmem_estimate(tb, seq, itemsize)
    vmem_limit = max(32 * 2 ** 20, int(1.3 * est) + 4 * 2 ** 20)
    vmem_limit = min(vmem_limit, int(0.85 * cap), 100 * 2 ** 20)
    vmem_limit = max(vmem_limit, 16 * 2 ** 20)

    flops_per_sample = (2 * seq * 5 * 32 + 2 * seq * (3 * 32) * 32
                        + 2 * (seq // 2) * (3 * 32) * 64
                        + 2 * (seq // 2) * (3 * 64) * 64
                        + 2 * 64 * 32 + 2 * 32 * 1)
    bytes_accessed = int(sum(int(np.prod(a.shape)) * a.dtype.itemsize for a in args)
                         + b_pad * OUT_LANES * 4)

    out_full = pl.pallas_call(
        cnn_kernel,
        out_shape=jax.ShapeDtypeStruct((b_pad, OUT_LANES), jnp.float32),
        grid=(nt,),
        in_specs=in_specs,
        out_specs=out_specs,
        scratch_shapes=scratch_shapes,
        compiler_params=pltpu.CompilerParams(
            dimension_semantics=("parallel",),
            vmem_limit_bytes=vmem_limit),
        cost_estimate=pl.CostEstimate(
            flops=b_pad * flops_per_sample,
            transcendentals=0,
            bytes_accessed=bytes_accessed),
    )(*args)
    return out_full[:b, :1]


# --------------------------- deterministic params ---------------------------
def init_params(key):
    ks = jax.random.split(key, 12)

    def conv_p(k, cout, cin, ksize):
        k1, k2 = jax.random.split(k)
        w = 0.1 * jax.random.normal(k1, (cout, cin, ksize), jnp.float32)
        bias = 0.1 * jax.random.normal(k2, (cout,), jnp.float32)
        return w, bias

    def bn_p(k, c):
        k1, k2, k3, k4 = jax.random.split(k, 4)
        gamma = 1.0 + 0.1 * jax.random.normal(k1, (c,), jnp.float32)
        beta = 0.1 * jax.random.normal(k2, (c,), jnp.float32)
        mean = 0.1 * jax.random.normal(k3, (c,), jnp.float32)
        var = 1.0 + 0.1 * jnp.abs(jax.random.normal(k4, (c,), jnp.float32))
        return gamma, beta, mean, var

    p = {}
    p["c11_w"], p["c11_b"] = conv_p(ks[0], 32, 1, 5)
    p["bn11"] = bn_p(ks[1], 32)
    p["c12_w"], p["c12_b"] = conv_p(ks[2], 32, 32, 3)
    p["bn12"] = bn_p(ks[3], 32)
    p["c21_w"], p["c21_b"] = conv_p(ks[4], 64, 32, 3)
    p["bn21"] = bn_p(ks[5], 64)
    p["c22_w"], p["c22_b"] = conv_p(ks[6], 64, 64, 3)
    p["bn22"] = bn_p(ks[7], 64)
    p["fc1_w"] = 0.1 * jax.random.normal(ks[8], (32, 64), jnp.float32)
    p["fc1_b"] = 0.1 * jax.random.normal(ks[9], (32,), jnp.float32)
    p["fc2_w"] = 0.1 * jax.random.normal(ks[10], (1, 32), jnp.float32)
    p["fc2_b"] = 0.1 * jax.random.normal(ks[11], (1,), jnp.float32)
    return p


# ------------------------- plain-JAX reference (NCW) -------------------------
def reference_forward(x, p):
    h = x[:, None, :].astype(jnp.float32)  # (B, 1, L), PyTorch NCW

    def conv(h, w, bias):
        pad = w.shape[-1] // 2
        dn = jax.lax.conv_dimension_numbers(h.shape, w.shape,
                                            ("NCH", "OIH", "NCH"))
        y = jax.lax.conv_general_dilated(h, w, (1,), [(pad, pad)],
                                         dimension_numbers=dn)
        return y + bias[None, :, None]

    def bn(h, stats):
        g, bta, m, v = stats
        return (g[None, :, None] * (h - m[None, :, None])
                / jnp.sqrt(v[None, :, None] + EPS) + bta[None, :, None])

    def pool2(h):
        b, c, l = h.shape
        return h.reshape(b, c, l // 2, 2).max(axis=-1)

    h = jnp.maximum(bn(conv(h, p["c11_w"], p["c11_b"]), p["bn11"]), 0.0)
    h = jnp.maximum(bn(conv(h, p["c12_w"], p["c12_b"]), p["bn12"]), 0.0)
    h = pool2(h)
    h = jnp.maximum(bn(conv(h, p["c21_w"], p["c21_b"]), p["bn21"]), 0.0)
    h = jnp.maximum(bn(conv(h, p["c22_w"], p["c22_b"]), p["bn22"]), 0.0)
    h = pool2(h)
    g = h.mean(axis=-1)                              # (B, 64)
    z = jnp.maximum(g @ p["fc1_w"].T + p["fc1_b"], 0.0)
    return z @ p["fc2_w"].T + p["fc2_b"]             # (B, 1)


# ---------------------------------- main -------------------------------------
if __name__ == "__main__":
    key = jax.random.PRNGKey(0)
    k_x, k_p = jax.random.split(key)

    batch, n_features = 2, 16
    x = jax.random.normal(k_x, (batch, n_features), jnp.float32)
    params = init_params(k_p)

    ref = jax.block_until_ready(reference_forward(x, params))

    # f32 compute: tight tolerance (v5e-friendly path).
    out_f32 = jax.block_until_ready(
        regularized_improved_cnn_pallas(x, params, compute_dtype=jnp.float32))
    np.testing.assert_allclose(np.asarray(out_f32), np.asarray(ref),
                               rtol=1e-4, atol=1e-4)

    # bf16 compute (v6e / v7x): bf16 weights/activations, f32 accumulation.
    out_bf16 = jax.block_until_ready(
        regularized_improved_cnn_pallas(x, params, compute_dtype=jnp.bfloat16))
    np.testing.assert_allclose(np.asarray(out_bf16), np.asarray(ref),
                               rtol=5e-2, atol=5e-2)

    # Auto-selected default (bf16 on v6e/v7x, f32 elsewhere).
    out_auto = jax.block_until_ready(regularized_improved_cnn_pallas(x, params))
    np.testing.assert_allclose(np.asarray(out_auto), np.asarray(ref),
                               rtol=5e-2, atol=5e-2)

    print("KERNEL_OK")
</pallas_src>

<mosaic_0001>
module attributes {stable_mosaic.version = 11 : i64} {
  func.func @cnn_kernel(%arg0: i32, %arg1: memref<1x20x2xf32, #tpu.memory_space<vmem>>, %arg2: memref<16x128xf32, #tpu.memory_space<vmem>>, %arg3: memref<96x32xf32, #tpu.memory_space<vmem>>, %arg4: memref<96x64xf32, #tpu.memory_space<vmem>>, %arg5: memref<192x64xf32, #tpu.memory_space<vmem>>, %arg6: memref<64x32xf32, #tpu.memory_space<vmem>>, %arg7: memref<32x128xf32, #tpu.memory_space<vmem>>, %arg8: memref<2x128xf32, #tpu.memory_space<vmem>>, %arg9: memref<36x32xf32, #tpu.memory_space<vmem>>, %arg10: memref<20x32xf32, #tpu.memory_space<vmem>>, %arg11: memref<20x64xf32, #tpu.memory_space<vmem>>) attributes {dimension_semantics = [#tpu.dimension_semantics<parallel>], iteration_bounds = array<i64: 1>, scalar_prefetch = 0 : i64, scratch_operands = 3 : i64, tpu.core_type = #tpu.core_type<tc>, window_params = [{transform_indices = @transform_0, window_bounds = array<i64: 1, 20, 2>}, {pipeline_mode = #tpu.pipeline_mode<synchronous>, transform_indices = @transform_1, window_bounds = array<i64: 16, 128>}, {pipeline_mode = #tpu.pipeline_mode<synchronous>, transform_indices = @transform_2, window_bounds = array<i64: 96, 32>}, {pipeline_mode = #tpu.pipeline_mode<synchronous>, transform_indices = @transform_3, window_bounds = array<i64: 96, 64>}, {pipeline_mode = #tpu.pipeline_mode<synchronous>, transform_indices = @transform_4, window_bounds = array<i64: 192, 64>}, {pipeline_mode = #tpu.pipeline_mode<synchronous>, transform_indices = @transform_5, window_bounds = array<i64: 64, 32>}, {pipeline_mode = #tpu.pipeline_mode<synchronous>, transform_indices = @transform_6, window_bounds = array<i64: 32, 128>}, {transform_indices = @transform_7, window_bounds = array<i64: 2, 128>}]} {
    %c0 = arith.constant 0 : index
    %c0_0 = arith.constant 0 : index
    %0 = vector.load %arg2[%c0, %c0_0] : memref<16x128xf32, #tpu.memory_space<vmem>>, vector<16x128xf32>
    %cst = arith.constant 0.000000e+00 : f32
    %1 = vector.broadcast %cst : f32 to vector<2x32xf32>
    %cst_1 = arith.constant 0.000000e+00 : f32
    %2 = vector.broadcast %cst_1 : f32 to vector<2x64xf32>
    %c0_2 = arith.constant 0 : index
    %c0_3 = arith.constant 0 : index
    %3 = vector.load %arg9[%c0_2, %c0_3] : memref<36x32xf32, #tpu.memory_space<vmem>>, vector<2x32xf32>
    tpu.vector_store %arg9[%c0_2, %c0_3], %1 {strides = array<i32>} : memref<36x32xf32, #tpu.memory_space<vmem>>, vector<2x32xf32>,
    %c34 = arith.constant 34 : index
    %c0_4 = arith.constant 0 : index
    %4 = vector.load %arg9[%c34, %c0_4] : memref<36x32xf32, #tpu.memory_space<vmem>>, vector<2x32xf32>
    tpu.vector_store %arg9[%c34, %c0_4], %1 {strides = array<i32>} : memref<36x32xf32, #tpu.memory_space<vmem>>, vector<2x32xf32>,
    %c0_5 = arith.constant 0 : index
    %c0_6 = arith.constant 0 : index
    %5 = vector.load %arg10[%c0_5, %c0_6] : memref<20x32xf32, #tpu.memory_space<vmem>>, vector<2x32xf32>
    tpu.vector_store %arg10[%c0_5, %c0_6], %1 {strides = array<i32>} : memref<20x32xf32, #tpu.memory_space<vmem>>, vector<2x32xf32>,
    %c18 = arith.constant 18 : index
    %c0_7 = arith.constant 0 : index
    %6 = vector.load %arg10[%c18, %c0_7] : memref<20x32xf32, #tpu.memory_space<vmem>>, vector<2x32xf32>
    tpu.vector_store %arg10[%c18, %c0_7], %1 {strides = array<i32>} : memref<20x32xf32, #tpu.memory_space<vmem>>, vector<2x32xf32>,
    %c0_8 = arith.constant 0 : index
    %c0_9 = arith.constant 0 : index
    %7 = vector.load %arg11[%c0_8, %c0_9] : memref<20x64xf32, #tpu.memory_space<vmem>>, vector<2x64xf32>
    tpu.vector_store %arg11[%c0_8, %c0_9], %2 {strides = array<i32>} : memref<20x64xf32, #tpu.memory_space<vmem>>, vector<2x64xf32>,
    %c18_10 = arith.constant 18 : index
    %c0_11 = arith.constant 0 : index
    %8 = vector.load %arg11[%c18_10, %c0_11] : memref<20x64xf32, #tpu.memory_space<vmem>>, vector<2x64xf32>
    tpu.vector_store %arg11[%c18_10, %c0_11], %2 {strides = array<i32>} : memref<20x64xf32, #tpu.memory_space<vmem>>, vector<2x64xf32>,
    %c0_12 = arith.constant 0 : index
    %c0_13 = arith.constant 0 : index
    %c0_14 = arith.constant 0 : index
    %9 = vector.load %arg1[%c0_12, %c0_13, %c0_14] : memref<1x20x2xf32, #tpu.memory_space<vmem>>, vector<1x20x2xf32>
    %10 = vector.shape_cast %9 : vector<1x20x2xf32> to vector<20x2xf32>
    %11 = vector.shape_cast %10 : vector<20x2xf32> to vector<20x2x1xf32>
    %12 = vector.extract_strided_slice %0 {offsets = [10, 0], sizes = [5, 32], strides = [1, 1]} : vector<16x128xf32> to vector<5x32xf32>
    %13 = vector.extract_strided_slice %11 {offsets = [0, 0, 0], sizes = [16, 2, 1], strides = [1, 1, 1]} : vector<20x2x1xf32> to vector<16x2x1xf32>
    %14 = vector.extract_strided_slice %12 {offsets = [0, 0], sizes = [1, 32], strides = [1, 1]} : vector<5x32xf32> to vector<1x32xf32>
    %15 = vector.shape_cast %14 : vector<1x32xf32> to vector<32xf32>
    %16 = vector.shape_cast %15 : vector<32xf32> to vector<1x1x32xf32>
    %17 = vector.broadcast %13 : vector<16x2x1xf32> to vector<16x2x32xf32>
    %18 = vector.broadcast %16 : vector<1x1x32xf32> to vector<16x2x32xf32>
    %19 = arith.mulf %17, %18 : vector<16x2x32xf32>
    %20 = vector.extract_strided_slice %11 {offsets = [1, 0, 0], sizes = [16, 2, 1], strides = [1, 1, 1]} : vector<20x2x1xf32> to vector<16x2x1xf32>
    %21 = vector.extract_strided_slice %12 {offsets = [1, 0], sizes = [1, 32], strides = [1, 1]} : vector<5x32xf32> to vector<1x32xf32>
    %22 = vector.shape_cast %21 : vector<1x32xf32> to vector<32xf32>
    %23 = vector.shape_cast %22 : vector<32xf32> to vector<1x1x32xf32>
    %24 = vector.broadcast %20 : vector<16x2x1xf32> to vector<16x2x32xf32>
    %25 = vector.broadcast %23 : vector<1x1x32xf32> to vector<16x2x32xf32>
    %26 = arith.mulf %24, %25 : vector<16x2x32xf32>
    %27 = arith.addf %19, %26 : vector<16x2x32xf32>
    %28 = vector.extract_strided_slice %11 {offsets = [2, 0, 0], sizes = [16, 2, 1], strides = [1, 1, 1]} : vector<20x2x1xf32> to vector<16x2x1xf32>
    %29 = vector.extract_strided_slice %12 {offsets = [2, 0], sizes = [1, 32], strides = [1, 1]} : vector<5x32xf32> to vector<1x32xf32>
    %30 = vector.shape_cast %29 : vector<1x32xf32> to vector<32xf32>
    %31 = vector.shape_cast %30 : vector<32xf32> to vector<1x1x32xf32>
    %32 = vector.broadcast %28 : vector<16x2x1xf32> to vector<16x2x32xf32>
    %33 = vector.broadcast %31 : vector<1x1x32xf32> to vector<16x2x32xf32>
    %34 = arith.mulf %32, %33 : vector<16x2x32xf32>
    %35 = arith.addf %27, %34 : vector<16x2x32xf32>
    %36 = vector.extract_strided_slice %11 {offsets = [3, 0, 0], sizes = [16, 2, 1], strides = [1, 1, 1]} : vector<20x2x1xf32> to vector<16x2x1xf32>
    %37 = vector.extract_strided_slice %12 {offsets = [3, 0], sizes = [1, 32], strides = [1, 1]} : vector<5x32xf32> to vector<1x32xf32>
    %38 = vector.shape_cast %37 : vector<1x32xf32> to vector<32xf32>
    %39 = vector.shape_cast %38 : vector<32xf32> to vector<1x1x32xf32>
    %40 = vector.broadcast %36 : vector<16x2x1xf32> to vector<16x2x32xf32>
    %41 = vector.broadcast %39 : vector<1x1x32xf32> to vector<16x2x32xf32>
    %42 = arith.mulf %40, %41 : vector<16x2x32xf32>
    %43 = arith.addf %35, %42 : vector<16x2x32xf32>
    %44 = vector.extract_strided_slice %11 {offsets = [4, 0, 0], sizes = [16, 2, 1], strides = [1, 1, 1]} : vector<20x2x1xf32> to vector<16x2x1xf32>
    %45 = vector.extract_strided_slice %12 {offsets = [4, 0], sizes = [1, 32], strides = [1, 1]} : vector<5x32xf32> to vector<1x32xf32>
    %46 = vector.shape_cast %45 : vector<1x32xf32> to vector<32xf32>
    %47 = vector.shape_cast %46 : vector<32xf32> to vector<1x1x32xf32>
    %48 = vector.broadcast %44 : vector<16x2x1xf32> to vector<16x2x32xf32>
    %49 = vector.broadcast %47 : vector<1x1x32xf32> to vector<16x2x32xf32>
    %50 = arith.mulf %48, %49 : vector<16x2x32xf32>
    %51 = arith.addf %43, %50 : vector<16x2x32xf32>
    %52 = vector.extract_strided_slice %0 {offsets = [0, 0], sizes = [1, 32], strides = [1, 1]} : vector<16x128xf32> to vector<1x32xf32>
    %53 = vector.shape_cast %52 : vector<1x32xf32> to vector<32xf32>
    %54 = vector.extract_strided_slice %0 {offsets = [1, 0], sizes = [1, 32], strides = [1, 1]} : vector<16x128xf32> to vector<1x32xf32>
    %55 = vector.shape_cast %54 : vector<1x32xf32> to vector<32xf32>
    %56 = vector.shape_cast %53 : vector<32xf32> to vector<1x1x32xf32>
    %57 = vector.broadcast %56 : vector<1x1x32xf32> to vector<16x2x32xf32>
    %58 = arith.mulf %51, %57 : vector<16x2x32xf32>
    %59 = vector.shape_cast %55 : vector<32xf32> to vector<1x1x32xf32>
    %60 = vector.broadcast %59 : vector<1x1x32xf32> to vector<16x2x32xf32>
    %61 = arith.addf %58, %60 : vector<16x2x32xf32>
    %cst_15 = arith.constant 0.000000e+00 : f32
    %62 = vector.broadcast %cst_15 : f32 to vector<16x2x32xf32>
    %63 = arith.maximumf %61, %62 : vector<16x2x32xf32>
    %64 = vector.shape_cast %63 : vector<16x2x32xf32> to vector<32x32xf32>
    %c2 = arith.constant 2 : index
    %c0_16 = arith.constant 0 : index
    %65 = vector.load %arg9[%c2, %c0_16] : memref<36x32xf32, #tpu.memory_space<vmem>>, vector<32x32xf32>
    tpu.vector_store %arg9[%c2, %c0_16], %64 {strides = array<i32>} : memref<36x32xf32, #tpu.memory_space<vmem>>, vector<32x32xf32>,
    %c0_17 = arith.constant 0 : index
    %c0_18 = arith.constant 0 : index
    %66 = vector.load %arg9[%c0_17, %c0_18] : memref<36x32xf32, #tpu.memory_space<vmem>>, vector<32x32xf32>
    %c0_19 = arith.constant 0 : index
    %c0_20 = arith.constant 0 : index
    %67 = vector.load %arg3[%c0_19, %c0_20] : memref<96x32xf32, #tpu.memory_space<vmem>>, vector<32x32xf32>
    %cst_21 = arith.constant dense<0.000000e+00> : vector<32x32xf32>
    %68 = tpu.matmul %66, %67, %cst_21 {dimension_numbers = #tpu.dot_dimension_numbers<[1], [0], [0], [1], [0, 0, 1, 1], [], []>} : vector<32x32xf32>, vector<32x32xf32>, vector<32x32xf32> -> vector<32x32xf32>
    %c2_22 = arith.constant 2 : index
    %c0_23 = arith.constant 0 : index
    %69 = vector.load %arg9[%c2_22, %c0_23] : memref<36x32xf32, #tpu.memory_space<vmem>>, vector<32x32xf32>
    %c32 = arith.constant 32 : index
    %c0_24 = arith.constant 0 : index
    %70 = vector.load %arg3[%c32, %c0_24] : memref<96x32xf32, #tpu.memory_space<vmem>>, vector<32x32xf32>
    %cst_25 = arith.constant dense<0.000000e+00> : vector<32x32xf32>
    %71 = tpu.matmul %69, %70, %cst_25 {dimension_numbers = #tpu.dot_dimension_numbers<[1], [0], [0], [1], [0, 0, 1, 1], [], []>} : vector<32x32xf32>, vector<32x32xf32>, vector<32x32xf32> -> vector<32x32xf32>
    %72 = arith.addf %68, %71 : vector<32x32xf32>
    %c4 = arith.constant 4 : index
    %c0_26 = arith.constant 0 : index
    %73 = vector.load %arg9[%c4, %c0_26] : memref<36x32xf32, #tpu.memory_space<vmem>>, vector<32x32xf32>
    %c64 = arith.constant 64 : index
    %c0_27 = arith.constant 0 : index
    %74 = vector.load %arg3[%c64, %c0_27] : memref<96x32xf32, #tpu.memory_space<vmem>>, vector<32x32xf32>
    %cst_28 = arith.constant dense<0.000000e+00> : vector<32x32xf32>
    %75 = tpu.matmul %73, %74, %cst_28 {dimension_numbers = #tpu.dot_dimension_numbers<[1], [0], [0], [1], [0, 0, 1, 1], [], []>} : vector<32x32xf32>, vector<32x32xf32>, vector<32x32xf32> -> vector<32x32xf32>
    %76 = arith.addf %72, %75 : vector<32x32xf32>
    %77 = vector.extract_strided_slice %0 {offsets = [2, 0], sizes = [1, 32], strides = [1, 1]} : vector<16x128xf32> to vector<1x32xf32>
    %78 = vector.shape_cast %77 : vector<1x32xf32> to vector<32xf32>
    %79 = vector.extract_strided_slice %0 {offsets = [3, 0], sizes = [1, 32], strides = [1, 1]} : vector<16x128xf32> to vector<1x32xf32>
    %80 = vector.shape_cast %79 : vector<1x32xf32> to vector<32xf32>
    %81 = vector.shape_cast %76 : vector<32x32xf32> to vector<8x4x32xf32>
    %82 = vector.extract_strided_slice %81 {offsets = [0, 0, 0], sizes = [8, 2, 32], strides = [1, 1, 1]} : vector<8x4x32xf32> to vector<8x2x32xf32>
    %83 = vector.shape_cast %78 : vector<32xf32> to vector<1x1x32xf32>
    %84 = vector.broadcast %83 : vector<1x1x32xf32> to vector<8x2x32xf32>
    %85 = arith.mulf %82, %84 : vector<8x2x32xf32>
    %86 = vector.shape_cast %80 : vector<32xf32> to vector<1x1x32xf32>
    %87 = vector.broadcast %86 : vector<1x1x32xf32> to vector<8x2x32xf32>
    %88 = arith.addf %85, %87 : vector<8x2x32xf32>
    %cst_29 = arith.constant 0.000000e+00 : f32
    %89 = vector.broadcast %cst_29 : f32 to vector<8x2x32xf32>
    %90 = arith.maximumf %88, %89 : vector<8x2x32xf32>
    %91 = vector.extract_strided_slice %81 {offsets = [0, 2, 0], sizes = [8, 2, 32], strides = [1, 1, 1]} : vector<8x4x32xf32> to vector<8x2x32xf32>
    %92 = vector.shape_cast %78 : vector<32xf32> to vector<1x1x32xf32>
    %93 = vector.broadcast %92 : vector<1x1x32xf32> to vector<8x2x32xf32>
    %94 = arith.mulf %91, %93 : vector<8x2x32xf32>
    %95 = vector.shape_cast %80 : vector<32xf32> to vector<1x1x32xf32>
    %96 = vector.broadcast %95 : vector<1x1x32xf32> to vector<8x2x32xf32>
    %97 = arith.addf %94, %96 : vector<8x2x32xf32>
    %cst_30 = arith.constant 0.000000e+00 : f32
    %98 = vector.broadcast %cst_30 : f32 to vector<8x2x32xf32>
    %99 = arith.maximumf %97, %98 : vector<8x2x32xf32>
    %100 = arith.maximumf %90, %99 : vector<8x2x32xf32>
    %101 = vector.shape_cast %100 : vector<8x2x32xf32> to vector<16x32xf32>
    %c2_31 = arith.constant 2 : index
    %c0_32 = arith.constant 0 : index
    %102 = vector.load %arg10[%c2_31, %c0_32] : memref<20x32xf32, #tpu.memory_space<vmem>>, vector<16x32xf32>
    tpu.vector_store %arg10[%c2_31, %c0_32], %101 {strides = array<i32>} : memref<20x32xf32, #tpu.memory_space<vmem>>, vector<16x32xf32>,
    %c0_33 = arith.constant 0 : index
    %c0_34 = arith.constant 0 : index
    %103 = vector.load %arg10[%c0_33, %c0_34] : memref<20x32xf32, #tpu.memory_space<vmem>>, vector<16x32xf32>
    %c0_35 = arith.constant 0 : index
    %c0_36 = arith.constant 0 : index
    %104 = vector.load %arg4[%c0_35, %c0_36] : memref<96x64xf32, #tpu.memory_space<vmem>>, vector<32x64xf32>
    %cst_37 = arith.constant dense<0.000000e+00> : vector<16x64xf32>
    %105 = tpu.matmul %103, %104, %cst_37 {dimension_numbers = #tpu.dot_dimension_numbers<[1], [0], [0], [1], [0, 0, 1, 1], [], []>} : vector<16x32xf32>, vector<32x64xf32>, vector<16x64xf32> -> vector<16x64xf32>
    %c2_38 = arith.constant 2 : index
    %c0_39 = arith.constant 0 : index
    %106 = vector.load %arg10[%c2_38, %c0_39] : memref<20x32xf32, #tpu.memory_space<vmem>>, vector<16x32xf32>
    %c32_40 = arith.constant 32 : index
    %c0_41 = arith.constant 0 : index
    %107 = vector.load %arg4[%c32_40, %c0_41] : memref<96x64xf32, #tpu.memory_space<vmem>>, vector<32x64xf32>
    %cst_42 = arith.constant dense<0.000000e+00> : vector<16x64xf32>
    %108 = tpu.matmul %106, %107, %cst_42 {dimension_numbers = #tpu.dot_dimension_numbers<[1], [0], [0], [1], [0, 0, 1, 1], [], []>} : vector<16x32xf32>, vector<32x64xf32>, vector<16x64xf32> -> vector<16x64xf32>
    %109 = arith.addf %105, %108 : vector<16x64xf32>
    %c4_43 = arith.constant 4 : index
    %c0_44 = arith.constant 0 : index
    %110 = vector.load %arg10[%c4_43, %c0_44] : memref<20x32xf32, #tpu.memory_space<vmem>>, vector<16x32xf32>
    %c64_45 = arith.constant 64 : index
    %c0_46 = arith.constant 0 : index
    %111 = vector.load %arg4[%c64_45, %c0_46] : memref<96x64xf32, #tpu.memory_space<vmem>>, vector<32x64xf32>
    %cst_47 = arith.constant dense<0.000000e+00> : vector<16x64xf32>
    %112 = tpu.matmul %110, %111, %cst_47 {dimension_numbers = #tpu.dot_dimension_numbers<[1], [0], [0], [1], [0, 0, 1, 1], [], []>} : vector<16x32xf32>, vector<32x64xf32>, vector<16x64xf32> -> vector<16x64xf32>
    %113 = arith.addf %109, %112 : vector<16x64xf32>
    %114 = vector.extract_strided_slice %0 {offsets = [4, 0], sizes = [1, 64], strides = [1, 1]} : vector<16x128xf32> to vector<1x64xf32>
    %115 = vector.shape_cast %114 : vector<1x64xf32> to vector<64xf32>
    %116 = vector.extract_strided_slice %0 {offsets = [5, 0], sizes = [1, 64], strides = [1, 1]} : vector<16x128xf32> to vector<1x64xf32>
    %117 = vector.shape_cast %116 : vector<1x64xf32> to vector<64xf32>
    %118 = vector.shape_cast %115 : vector<64xf32> to vector<1x64xf32>
    %119 = vector.broadcast %118 : vector<1x64xf32> to vector<16x64xf32>
    %120 = arith.mulf %113, %119 : vector<16x64xf32>
    %121 = vector.shape_cast %117 : vector<64xf32> to vector<1x64xf32>
    %122 = vector.broadcast %121 : vector<1x64xf32> to vector<16x64xf32>
    %123 = arith.addf %120, %122 : vector<16x64xf32>
    %cst_48 = arith.constant 0.000000e+00 : f32
    %124 = vector.broadcast %cst_48 : f32 to vector<16x64xf32>
    %125 = arith.maximumf %123, %124 : vector<16x64xf32>
    %c2_49 = arith.constant 2 : index
    %c0_50 = arith.constant 0 : index
    %126 = vector.load %arg11[%c2_49, %c0_50] : memref<20x64xf32, #tpu.memory_space<vmem>>, vector<16x64xf32>
    tpu.vector_store %arg11[%c2_49, %c0_50], %125 {strides = array<i32>} : memref<20x64xf32, #tpu.memory_space<vmem>>, vector<16x64xf32>,
    %c0_51 = arith.constant 0 : index
    %c0_52 = arith.constant 0 : index
    %127 = vector.load %arg11[%c0_51, %c0_52] : memref<20x64xf32, #tpu.memory_space<vmem>>, vector<16x64xf32>
    %c0_53 = arith.constant 0 : index
    %c0_54 = arith.constant 0 : index
    %128 = vector.load %arg5[%c0_53, %c0_54] : memref<192x64xf32, #tpu.memory_space<vmem>>, vector<64x64xf32>
    %cst_55 = arith.constant dense<0.000000e+00> : vector<16x64xf32>
    %129 = tpu.matmul %127, %128, %cst_55 {dimension_numbers = #tpu.dot_dimension_numbers<[1], [0], [0], [1], [0, 0, 1, 1], [], []>} : vector<16x64xf32>, vector<64x64xf32>, vector<16x64xf32> -> vector<16x64xf32>
    %c2_56 = arith.constant 2 : index
    %c0_57 = arith.constant 0 : index
    %130 = vector.load %arg11[%c2_56, %c0_57] : memref<20x64xf32, #tpu.memory_space<vmem>>, vector<16x64xf32>
    %c64_58 = arith.constant 64 : index
    %c0_59 = arith.constant 0 : index
    %131 = vector.load %arg5[%c64_58, %c0_59] : memref<192x64xf32, #tpu.memory_space<vmem>>, vector<64x64xf32>
    %cst_60 = arith.constant dense<0.000000e+00> : vector<16x64xf32>
    %132 = tpu.matmul %130, %131, %cst_60 {dimension_numbers = #tpu.dot_dimension_numbers<[1], [0], [0], [1], [0, 0, 1, 1], [], []>} : vector<16x64xf32>, vector<64x64xf32>, vector<16x64xf32> -> vector<16x64xf32>
    %133 = arith.addf %129, %132 : vector<16x64xf32>
    %c4_61 = arith.constant 4 : index
    %c0_62 = arith.constant 0 : index
    %134 = vector.load %arg11[%c4_61, %c0_62] : memref<20x64xf32, #tpu.memory_space<vmem>>, vector<16x64xf32>
    %c128 = arith.constant 128 : index
    %c0_63 = arith.constant 0 : index
    %135 = vector.load %arg5[%c128, %c0_63] : memref<192x64xf32, #tpu.memory_space<vmem>>, vector<64x64xf32>
    %cst_64 = arith.constant dense<0.000000e+00> : vector<16x64xf32>
    %136 = tpu.matmul %134, %135, %cst_64 {dimension_numbers = #tpu.dot_dimension_numbers<[1], [0], [0], [1], [0, 0, 1, 1], [], []>} : vector<16x64xf32>, vector<64x64xf32>, vector<16x64xf32> -> vector<16x64xf32>
    %137 = arith.addf %133, %136 : vector<16x64xf32>
    %138 = vector.extract_strided_slice %0 {offsets = [6, 0], sizes = [1, 64], strides = [1, 1]} : vector<16x128xf32> to vector<1x64xf32>
    %139 = vector.shape_cast %138 : vector<1x64xf32> to vector<64xf32>
    %140 = vector.extract_strided_slice %0 {offsets = [7, 0], sizes = [1, 64], strides = [1, 1]} : vector<16x128xf32> to vector<1x64xf32>
    %141 = vector.shape_cast %140 : vector<1x64xf32> to vector<64xf32>
    %142 = vector.shape_cast %137 : vector<16x64xf32> to vector<4x4x64xf32>
    %143 = vector.extract_strided_slice %142 {offsets = [0, 0, 0], sizes = [4, 2, 64], strides = [1, 1, 1]} : vector<4x4x64xf32> to vector<4x2x64xf32>
    %144 = vector.shape_cast %139 : vector<64xf32> to vector<1x1x64xf32>
    %145 = vector.broadcast %144 : vector<1x1x64xf32> to vector<4x2x64xf32>
    %146 = arith.mulf %143, %145 : vector<4x2x64xf32>
    %147 = vector.shape_cast %141 : vector<64xf32> to vector<1x1x64xf32>
    %148 = vector.broadcast %147 : vector<1x1x64xf32> to vector<4x2x64xf32>
    %149 = arith.addf %146, %148 : vector<4x2x64xf32>
    %cst_65 = arith.constant 0.000000e+00 : f32
    %150 = vector.broadcast %cst_65 : f32 to vector<4x2x64xf32>
    %151 = arith.maximumf %149, %150 : vector<4x2x64xf32>
    %152 = vector.extract_strided_slice %142 {offsets = [0, 2, 0], sizes = [4, 2, 64], strides = [1, 1, 1]} : vector<4x4x64xf32> to vector<4x2x64xf32>
    %153 = vector.shape_cast %139 : vector<64xf32> to vector<1x1x64xf32>
    %154 = vector.broadcast %153 : vector<1x1x64xf32> to vector<4x2x64xf32>
    %155 = arith.mulf %152, %154 : vector<4x2x64xf32>
    %156 = vector.shape_cast %141 : vector<64xf32> to vector<1x1x64xf32>
    %157 = vector.broadcast %156 : vector<1x1x64xf32> to vector<4x2x64xf32>
    %158 = arith.addf %155, %157 : vector<4x2x64xf32>
    %cst_66 = arith.constant 0.000000e+00 : f32
    %159 = vector.broadcast %cst_66 : f32 to vector<4x2x64xf32>
    %160 = arith.maximumf %158, %159 : vector<4x2x64xf32>
    %161 = arith.maximumf %151, %160 : vector<4x2x64xf32>
    %162 = vector.shape_cast %161 : vector<4x2x64xf32> to vector<8x64xf32>
    %163 = vector.shape_cast %162 : vector<8x64xf32> to vector<4x2x64xf32>
    %cst_67 = arith.constant dense<0.000000e+00> : vector<2x64xf32>
    %164 = vector.multi_reduction <add>, %163, %cst_67 [0] : vector<4x2x64xf32> to vector<2x64xf32>
    %cst_68 = arith.constant 2.500000e-01 : f32
    %165 = vector.broadcast %cst_68 : f32 to vector<2x64xf32>
    %166 = arith.mulf %164, %165 : vector<2x64xf32>
    %c0_69 = arith.constant 0 : index
    %c0_70 = arith.constant 0 : index
    %167 = vector.load %arg6[%c0_69, %c0_70] : memref<64x32xf32, #tpu.memory_space<vmem>>, vector<64x32xf32>
    %cst_71 = arith.constant dense<0.000000e+00> : vector<2x32xf32>
    %168 = tpu.matmul %166, %167, %cst_71 {dimension_numbers = #tpu.dot_dimension_numbers<[1], [0], [0], [1], [0, 0, 1, 1], [], []>} : vector<2x64xf32>, vector<64x32xf32>, vector<2x32xf32> -> vector<2x32xf32>
    %169 = vector.extract_strided_slice %0 {offsets = [8, 0], sizes = [1, 32], strides = [1, 1]} : vector<16x128xf32> to vector<1x32xf32>
    %170 = vector.shape_cast %169 : vector<1x32xf32> to vector<32xf32>
    %171 = vector.shape_cast %170 : vector<32xf32> to vector<1x32xf32>
    %172 = vector.broadcast %171 : vector<1x32xf32> to vector<2x32xf32>
    %173 = arith.addf %168, %172 : vector<2x32xf32>
    %cst_72 = arith.constant 0.000000e+00 : f32
    %174 = vector.broadcast %cst_72 : f32 to vector<2x32xf32>
    %175 = arith.maximumf %173, %174 : vector<2x32xf32>
    %c0_73 = arith.constant 0 : index
    %c0_74 = arith.constant 0 : index
    %176 = vector.load %arg7[%c0_73, %c0_74] : memref<32x128xf32, #tpu.memory_space<vmem>>, vector<32x128xf32>
    %cst_75 = arith.constant dense<0.000000e+00> : vector<2x128xf32>
    %177 = tpu.matmul %175, %176, %cst_75 {dimension_numbers = #tpu.dot_dimension_numbers<[1], [0], [0], [1], [0, 0, 1, 1], [], []>} : vector<2x32xf32>, vector<32x128xf32>, vector<2x128xf32> -> vector<2x128xf32>
    %178 = vector.extract_strided_slice %0 {offsets = [9, 0], sizes = [1, 128], strides = [1, 1]} : vector<16x128xf32> to vector<1x128xf32>
    %179 = vector.shape_cast %178 : vector<1x128xf32> to vector<128xf32>
    %180 = vector.shape_cast %179 : vector<128xf32> to vector<1x128xf32>
    %181 = vector.broadcast %180 : vector<1x128xf32> to vector<2x128xf32>
    %182 = arith.addf %177, %181 : vector<2x128xf32>
    %c0_76 = arith.constant 0 : index
    %c0_77 = arith.constant 0 : index
    %183 = vector.load %arg8[%c0_76, %c0_77] : memref<2x128xf32, #tpu.memory_space<vmem>>, vector<2x128xf32>
    tpu.vector_store %arg8[%c0_76, %c0_77], %182 {strides = array<i32>} : memref<2x128xf32, #tpu.memory_space<vmem>>, vector<2x128xf32>,
    return
  }
  func.func @transform_0(%arg0: i32) -> (i32, i32, i32) {
    %c0_i32 = arith.constant 0 : i32
    %c0_i32_0 = arith.constant 0 : i32
    %c0_i32_1 = arith.constant 0 : i32
    return %arg0, %c0_i32, %c0_i32_0 : i32, i32, i32
  }
  func.func @transform_1(%arg0: i32) -> (i32, i32) {
    %c0_i32 = arith.constant 0 : i32
    %c0_i32_0 = arith.constant 0 : i32
    %c0_i32_1 = arith.constant 0 : i32
    return %c0_i32, %c0_i32_0 : i32, i32
  }
  func.func @transform_2(%arg0: i32) -> (i32, i32) {
    %c0_i32 = arith.constant 0 : i32
    %c0_i32_0 = arith.constant 0 : i32
    %c0_i32_1 = arith.constant 0 : i32
    return %c0_i32, %c0_i32_0 : i32, i32
  }
  func.func @transform_3(%arg0: i32) -> (i32, i32) {
    %c0_i32 = arith.constant 0 : i32
    %c0_i32_0 = arith.constant 0 : i32
    %c0_i32_1 = arith.constant 0 : i32
    return %c0_i32, %c0_i32_0 : i32, i32
  }
  func.func @transform_4(%arg0: i32) -> (i32, i32) {
    %c0_i32 = arith.constant 0 : i32
    %c0_i32_0 = arith.constant 0 : i32
    %c0_i32_1 = arith.constant 0 : i32
    return %c0_i32, %c0_i32_0 : i32, i32
  }
  func.func @transform_5(%arg0: i32) -> (i32, i32) {
    %c0_i32 = arith.constant 0 : i32
    %c0_i32_0 = arith.constant 0 : i32
    %c0_i32_1 = arith.constant 0 : i32
    return %c0_i32, %c0_i32_0 : i32, i32
  }
  func.func @transform_6(%arg0: i32) -> (i32, i32) {
    %c0_i32 = arith.constant 0 : i32
    %c0_i32_0 = arith.constant 0 : i32
    %c0_i32_1 = arith.constant 0 : i32
    return %c0_i32, %c0_i32_0 : i32, i32
  }
  func.func @transform_7(%arg0: i32) -> (i32, i32) {
    %c0_i32 = arith.constant 0 : i32
    %c0_i32_0 = arith.constant 0 : i32
    return %arg0, %c0_i32 : i32, i32
  }
}

</mosaic_0001>

<llo_original>
// kernel: tpu_custom_call.1
$region0: #{tpu_custom_call.1}
  #allocation0 [shape = 'u32[]', space=smem, size = 0x4, offset = 0x4, fixed_abs, tag = 'smem constant byte address 0x4 - core index']
  #allocation1 [shape = 'u32[72,128]{1,0:T(1,128)}', space=vmem, size = 0x9000, scoped, tag = 'internal scratch']
  #allocation2 [shape = 'f32[36,32]{1,0:T(8,128)}', space=vmem, size = 0x5000, scoped, tag = 'scratch operand']
  #allocation3 [shape = 'f32[20,32]{1,0:T(8,128)}', space=vmem, size = 0x3000, scoped, tag = 'scratch operand']
  #allocation4 [shape = 'f32[20,64]{1,0:T(8,128)}', space=vmem, size = 0x3000, scoped, tag = 'scratch operand']
  %s0 = inlined_call_operand.vmem [shape: f32[1,20,2], index: 0, kind: input, shape index: {}]
  %s1 = inlined_call_operand.vmem [shape: f32[16,128], index: 1, kind: input, shape index: {}]
  %s2 = inlined_call_operand.vmem [shape: f32[96,32], index: 2, kind: input, shape index: {}]
  %s3 = inlined_call_operand.vmem [shape: f32[96,64], index: 3, kind: input, shape index: {}]
  %s4 = inlined_call_operand.vmem [shape: f32[192,64], index: 4, kind: input, shape index: {}]
  %s5 = inlined_call_operand.vmem [shape: f32[64,32], index: 5, kind: input, shape index: {}]
  %s6 = inlined_call_operand.vmem [shape: f32[32,128], index: 6, kind: input, shape index: {}]
  %s7 = inlined_call_operand.hbm [shape: f32[2,128], index: 7, kind: output, shape index: {}]
  %s8 = sld [smem:[#allocation0]]
  $region38: #{tpu_custom_call.1} parent=0
    _
  %s10 = ssub.s32 1, %s8
  %s11 = scalar_select 0, %s10, %s8
  $region1: #{tpu_custom_call.1} parent=0
    #allocation5 [shape = 'u8[1024]{0}', space=vmem, size = 0x400, scoped, tag = 'output window, operand 0, single buffered']
    #allocation6 [shape = 's32[1]{0}', space=sflag, size = 0x4, scoped, tag = 'scoped memory for tpu_custom_call.1']
    %12 = vsyncpa [#allocation6], 0
    // Predicated region
    $region2: #{tpu_custom_call.1} parent=1 // pred_check
      _
    $region3: #{tpu_custom_call.1} parent=1 // pred_check_branch
      %14 = sbr.rel (0) target = $region5
    $region4: #{tpu_custom_call.1} parent=1 // pred_region
      _
    $region5: #{tpu_custom_call.1} parent=1 // pred_fallthru
      _
    // Predicated region
    $region6: #{tpu_custom_call.1} parent=1 // pred_check
      _
    $region7: #{tpu_custom_call.1} parent=1 // pred_check_branch
      %16 = sbr.rel (0) target = $region9
    $region8: #{tpu_custom_call.1} parent=1 // pred_region
      _
    $region9: #{tpu_custom_call.1} parent=1 // pred_fallthru
      _
    // Predicated region
    $region10: #{tpu_custom_call.1} parent=1 // pred_check
      _
    $region11: #{tpu_custom_call.1} parent=1 // pred_check_branch
      %18 = sbr.rel (0) target = $region13
    $region12: #{tpu_custom_call.1} parent=1 // pred_region
      _
    $region13: #{tpu_custom_call.1} parent=1 // pred_fallthru
      _
    // Predicated region
    $region14: #{tpu_custom_call.1} parent=1 // pred_check
      _
    $region15: #{tpu_custom_call.1} parent=1 // pred_check_branch
      %20 = sbr.rel (0) target = $region17
    $region16: #{tpu_custom_call.1} parent=1 // pred_region
      _
    $region17: #{tpu_custom_call.1} parent=1 // pred_fallthru
      _
    // Predicated region
    $region18: #{tpu_custom_call.1} parent=1 // pred_check
      _
    $region19: #{tpu_custom_call.1} parent=1 // pred_check_branch
      %22 = sbr.rel (0) target = $region21
    $region20: #{tpu_custom_call.1} parent=1 // pred_region
      _
    $region21: #{tpu_custom_call.1} parent=1 // pred_fallthru
      _
    // Predicated region
    $region22: #{tpu_custom_call.1} parent=1 // pred_check
      _
    $region23: #{tpu_custom_call.1} parent=1 // pred_check_branch
      %24 = sbr.rel (0) target = $region25
    $region24: #{tpu_custom_call.1} parent=1 // pred_region
      _
    $region25: #{tpu_custom_call.1} parent=1 // pred_fallthru
      _
    // Predicated region
    $region26: #{tpu_custom_call.1} parent=1 // pred_check
      _
    $region27: #{tpu_custom_call.1} parent=1 // pred_check_branch
      %26 = sbr.rel (0) target = $region29
    $region28: #{tpu_custom_call.1} parent=1 // pred_region
      _
    $region29: #{tpu_custom_call.1} parent=1 // pred_fallthru
      _
    %v27 = vld [vmem:[%s1] sm:$0xff]
    %v28 = vld [vmem:[%s1 + $0x8] sm:$0xff]
    %vm29 = vcmask 254976
    %30 = vst.msk [vmem:[#allocation2] sm:$0x3] %vm29, 0.0
    %31 = vst.msk [vmem:[#allocation2 + $0x22] sm:$0x3] %vm29, 0.0
    %32 = vst.msk [vmem:[#allocation3] sm:$0x3] %vm29, 0.0
    %33 = vst.msk [vmem:[#allocation3 + $0x12] sm:$0x3] %vm29, 0.0
    %vm34 = vcmask 517120
    %35 = vst.msk [vmem:[#allocation4] sm:$0x3] %vm34, 0.0
    %36 = vst.msk [vmem:[#allocation4 + $0x12] sm:$0x3] %vm34, 0.0
    %v37 = vld [vmem:[%s0] sm:$0xff]
    %v38 = vld [vmem:[%s0 + $0x8] sm:$0xff]
    %v39 = vld [vmem:[%s0 + $0x10] sm:$0xf]
    %v40 = vperm.slane %v37, 0
    %v41 = vlaneseq
    %v42 = vshrl.u32 %v41, 7
    %44 = vset.pattern.permute.xlu0 %v42
    %45 = vperm.xlu0 %44, %v40
    %v46 = vpop.permute.xlu0 %45
    %v47 = vperm.slane %v37, 1
    %v48 = vlaneseq
    %v49 = vshrl.u32 %v48, 7
    %51 = vset.pattern.permute.xlu0 %v49
    %52 = vperm.xlu0 %51, %v47
    %v53 = vpop.permute.xlu0 %52
    %v54 = vperm.slane %v37, 2
    %v55 = vlaneseq
    %v56 = vshrl.u32 %v55, 7
    %58 = vset.pattern.permute.xlu0 %v56
    %59 = vperm.xlu0 %58, %v54
    %v60 = vpop.permute.xlu0 %59
    %v61 = vperm.slane %v37, 3
    %v62 = vlaneseq
    %v63 = vshrl.u32 %v62, 7
    %65 = vset.pattern.permute.xlu0 %v63
    %66 = vperm.xlu0 %65, %v61
    %v67 = vpop.permute.xlu0 %66
    %v68 = vperm.slane %v37, 4
    %v69 = vlaneseq
    %v70 = vshrl.u32 %v69, 7
    %72 = vset.pattern.permute.xlu0 %v70
    %73 = vperm.xlu0 %72, %v68
    %v74 = vpop.permute.xlu0 %73
    %v75 = vperm.slane %v37, 5
    %v76 = vlaneseq
    %v77 = vshrl.u32 %v76, 7
    %79 = vset.pattern.permute.xlu0 %v77
    %80 = vperm.xlu0 %79, %v75
    %v81 = vpop.permute.xlu0 %80
    %v82 = vperm.slane %v37, 6
    %v83 = vlaneseq
    %v84 = vshrl.u32 %v83, 7
    %86 = vset.pattern.permute.xlu0 %v84
    %87 = vperm.xlu0 %86, %v82
    %v88 = vpop.permute.xlu0 %87
    %v89 = vperm.slane %v37, 7
    %v90 = vlaneseq
    %v91 = vshrl.u32 %v90, 7
    %93 = vset.pattern.permute.xlu0 %v91
    %94 = vperm.xlu0 %93, %v89
    %v95 = vpop.permute.xlu0 %94
    %v96 = vperm.slane %v38, 0
    %v97 = vlaneseq
    %v98 = vshrl.u32 %v97, 7
    %100 = vset.pattern.permute.xlu0 %v98
    %101 = vperm.xlu0 %100, %v96
    %v102 = vpop.permute.xlu0 %101
    %v103 = vperm.slane %v38, 1
    %v104 = vlaneseq
    %v105 = vshrl.u32 %v104, 7
    %107 = vset.pattern.permute.xlu0 %v105
    %108 = vperm.xlu0 %107, %v103
    %v109 = vpop.permute.xlu0 %108
    %v110 = vperm.slane %v38, 2
    %v111 = vlaneseq
    %v112 = vshrl.u32 %v111, 7
    %114 = vset.pattern.permute.xlu0 %v112
    %115 = vperm.xlu0 %114, %v110
    %v116 = vpop.permute.xlu0 %115
    %v117 = vperm.slane %v38, 3
    %v118 = vlaneseq
    %v119 = vshrl.u32 %v118, 7
    %121 = vset.pattern.permute.xlu0 %v119
    %122 = vperm.xlu0 %121, %v117
    %v123 = vpop.permute.xlu0 %122
    %v124 = vperm.slane %v38, 4
    %v125 = vlaneseq
    %v126 = vshrl.u32 %v125, 7
    %128 = vset.pattern.permute.xlu0 %v126
    %129 = vperm.xlu0 %128, %v124
    %v130 = vpop.permute.xlu0 %129
    %v131 = vperm.slane %v38, 5
    %v132 = vlaneseq
    %v133 = vshrl.u32 %v132, 7
    %135 = vset.pattern.permute.xlu0 %v133
    %136 = vperm.xlu0 %135, %v131
    %v137 = vpop.permute.xlu0 %136
    %v138 = vperm.slane %v38, 6
    %v139 = vlaneseq
    %v140 = vshrl.u32 %v139, 7
    %142 = vset.pattern.permute.xlu0 %v140
    %143 = vperm.xlu0 %142, %v138
    %v144 = vpop.permute.xlu0 %143
    %v145 = vperm.slane %v38, 7
    %v146 = vlaneseq
    %v147 = vshrl.u32 %v146, 7
    %149 = vset.pattern.permute.xlu0 %v147
    %150 = vperm.xlu0 %149, %v145
    %v151 = vpop.permute.xlu0 %150
    %v152 = vperm.slane %v39, 0
    %v153 = vlaneseq
    %v154 = vshrl.u32 %v153, 7
    %156 = vset.pattern.permute.xlu0 %v154
    %157 = vperm.xlu0 %156, %v152
    %v158 = vpop.permute.xlu0 %157
    %v159 = vperm.slane %v39, 1
    %v160 = vlaneseq
    %v161 = vshrl.u32 %v160, 7
    %163 = vset.pattern.permute.xlu0 %v161
    %164 = vperm.xlu0 %163, %v159
    %v165 = vpop.permute.xlu0 %164
    %v166 = vperm.slane %v39, 2
    %v167 = vlaneseq
    %v168 = vshrl.u32 %v167, 7
    %170 = vset.pattern.permute.xlu0 %v168
    %171 = vperm.xlu0 %170, %v166
    %v172 = vpop.permute.xlu0 %171
    %v173 = vperm.slane %v39, 3
    %v174 = vlaneseq
    %v175 = vshrl.u32 %v174, 7
    %177 = vset.pattern.permute.xlu0 %v175
    %178 = vperm.xlu0 %177, %v173
    %v179 = vpop.permute.xlu0 %178
    %v180 = vperm.slane %v28, 2
    %v181 = vmul.f32 %v46, %v180
    %v182 = vmul.f32 %v53, %v180
    %v183 = vmul.f32 %v60, %v180
    %v184 = vmul.f32 %v67, %v180
    %v185 = vmul.f32 %v74, %v180
    %v186 = vmul.f32 %v81, %v180
    %v187 = vmul.f32 %v88, %v180
    %v188 = vmul.f32 %v95, %v180
    %v189 = vmul.f32 %v102, %v180
    %v190 = vmul.f32 %v109, %v180
    %v191 = vmul.f32 %v116, %v180
    %v192 = vmul.f32 %v123, %v180
    %v193 = vmul.f32 %v130, %v180
    %v194 = vmul.f32 %v137, %v180
    %v195 = vmul.f32 %v144, %v180
    %v196 = vmul.f32 %v151, %v180
    %v197 = vperm.slane %v28, 3
    %v198 = vmul.f32 %v53, %v197
    %v199 = vmul.f32 %v60, %v197
    %v200 = vmul.f32 %v67, %v197
    %v201 = vmul.f32 %v74, %v197
    %v202 = vmul.f32 %v81, %v197
    %v203 = vmul.f32 %v88, %v197
    %v204 = vmul.f32 %v95, %v197
    %v205 = vmul.f32 %v102, %v197
    %v206 = vmul.f32 %v109, %v197
    %v207 = vmul.f32 %v116, %v197
    %v208 = vmul.f32 %v123, %v197
    %v209 = vmul.f32 %v130, %v197
    %v210 = vmul.f32 %v137, %v197
    %v211 = vmul.f32 %v144, %v197
    %v212 = vmul.f32 %v151, %v197
    %v213 = vmul.f32 %v158, %v197
    %v214 = vadd.f32 %v181, %v198
    %v215 = vadd.f32 %v182, %v199
    %v216 = vadd.f32 %v183, %v200
    %v217 = vadd.f32 %v184, %v201
    %v218 = vadd.f32 %v185, %v202
    %v219 = vadd.f32 %v186, %v203
    %v220 = vadd.f32 %v187, %v204
    %v221 = vadd.f32 %v188, %v205
    %v222 = vadd.f32 %v189, %v206
    %v223 = vadd.f32 %v190, %v207
    %v224 = vadd.f32 %v191, %v208
    %v225 = vadd.f32 %v192, %v209
    %v226 = vadd.f32 %v193, %v210
    %v227 = vadd.f32 %v194, %v211
    %v228 = vadd.f32 %v195, %v212
    %v229 = vadd.f32 %v196, %v213
    %v230 = vperm.slane %v28, 4
    %v231 = vmul.f32 %v60, %v230
    %v232 = vmul.f32 %v67, %v230
    %v233 = vmul.f32 %v74, %v230
    %v234 = vmul.f32 %v81, %v230
    %v235 = vmul.f32 %v88, %v230
    %v236 = vmul.f32 %v95, %v230
    %v237 = vmul.f32 %v102, %v230
    %v238 = vmul.f32 %v109, %v230
    %v239 = vmul.f32 %v116, %v230
    %v240 = vmul.f32 %v123, %v230
    %v241 = vmul.f32 %v130, %v230
    %v242 = vmul.f32 %v137, %v230
    %v243 = vmul.f32 %v144, %v230
    %v244 = vmul.f32 %v151, %v230
    %v245 = vmul.f32 %v158, %v230
    %v246 = vmul.f32 %v165, %v230
    %v247 = vadd.f32 %v214, %v231
    %v248 = vadd.f32 %v215, %v232
    %v249 = vadd.f32 %v216, %v233
    %v250 = vadd.f32 %v217, %v234
    %v251 = vadd.f32 %v218, %v235
    %v252 = vadd.f32 %v219, %v236
    %v253 = vadd.f32 %v220, %v237
    %v254 = vadd.f32 %v221, %v238
    %v255 = vadd.f32 %v222, %v239
    %v256 = vadd.f32 %v223, %v240
    %v257 = vadd.f32 %v224, %v241
    %v258 = vadd.f32 %v225, %v242
    %v259 = vadd.f32 %v226, %v243
    %v260 = vadd.f32 %v227, %v244
    %v261 = vadd.f32 %v228, %v245
    %v262 = vadd.f32 %v229, %v246
    %v263 = vperm.slane %v28, 5
    %v264 = vmul.f32 %v67, %v263
    %v265 = vmul.f32 %v74, %v263
    %v266 = vmul.f32 %v81, %v263
    %v267 = vmul.f32 %v88, %v263
    %v268 = vmul.f32 %v95, %v263
    %v269 = vmul.f32 %v102, %v263
    %v270 = vmul.f32 %v109, %v263
    %v271 = vmul.f32 %v116, %v263
    %v272 = vmul.f32 %v123, %v263
    %v273 = vmul.f32 %v130, %v263
    %v274 = vmul.f32 %v137, %v263
    %v275 = vmul.f32 %v144, %v263
    %v276 = vmul.f32 %v151, %v263
    %v277 = vmul.f32 %v158, %v263
    %v278 = vmul.f32 %v165, %v263
    %v279 = vmul.f32 %v172, %v263
    %v280 = vadd.f32 %v247, %v264
    %v281 = vadd.f32 %v248, %v265
    %v282 = vadd.f32 %v249, %v266
    %v283 = vadd.f32 %v250, %v267
    %v284 = vadd.f32 %v251, %v268
    %v285 = vadd.f32 %v252, %v269
    %v286 = vadd.f32 %v253, %v270
    %v287 = vadd.f32 %v254, %v271
    %v288 = vadd.f32 %v255, %v272
    %v289 = vadd.f32 %v256, %v273
    %v290 = vadd.f32 %v257, %v274
    %v291 = vadd.f32 %v258, %v275
    %v292 = vadd.f32 %v259, %v276
    %v293 = vadd.f32 %v260, %v277
    %v294 = vadd.f32 %v261, %v278
    %v295 = vadd.f32 %v262, %v279
    %v296 = vperm.slane %v28, 6
    %v297 = vmul.f32 %v74, %v296
    %v298 = vmul.f32 %v81, %v296
    %v299 = vmul.f32 %v88, %v296
    %v300 = vmul.f32 %v95, %v296
    %v301 = vmul.f32 %v102, %v296
    %v302 = vmul.f32 %v109, %v296
    %v303 = vmul.f32 %v116, %v296
    %v304 = vmul.f32 %v123, %v296
    %v305 = vmul.f32 %v130, %v296
    %v306 = vmul.f32 %v137, %v296
    %v307 = vmul.f32 %v144, %v296
    %v308 = vmul.f32 %v151, %v296
    %v309 = vmul.f32 %v158, %v296
    %v310 = vmul.f32 %v165, %v296
    %v311 = vmul.f32 %v172, %v296
    %v312 = vmul.f32 %v179, %v296
    %v313 = vadd.f32 %v280, %v297
    %v314 = vadd.f32 %v281, %v298
    %v315 = vadd.f32 %v282, %v299
    %v316 = vadd.f32 %v283, %v300
    %v317 = vadd.f32 %v284, %v301
    %v318 = vadd.f32 %v285, %v302
    %v319 = vadd.f32 %v286, %v303
    %v320 = vadd.f32 %v287, %v304
    %v321 = vadd.f32 %v288, %v305
    %v322 = vadd.f32 %v289, %v306
    %v323 = vadd.f32 %v290, %v307
    %v324 = vadd.f32 %v291, %v308
    %v325 = vadd.f32 %v292, %v309
    %v326 = vadd.f32 %v293, %v310
    %v327 = vadd.f32 %v294, %v311
    %v328 = vadd.f32 %v295, %v312
    %v329 = vperm.slane %v27, 0
    %v330 = vmul.f32 %v313, %v329
    %v331 = vmul.f32 %v314, %v329
    %v332 = vmul.f32 %v315, %v329
    %v333 = vmul.f32 %v316, %v329
    %v334 = vmul.f32 %v317, %v329
    %v335 = vmul.f32 %v318, %v329
    %v336 = vmul.f32 %v319, %v329
    %v337 = vmul.f32 %v320, %v329
    %v338 = vmul.f32 %v321, %v329
    %v339 = vmul.f32 %v322, %v329
    %v340 = vmul.f32 %v323, %v329
    %v341 = vmul.f32 %v324, %v329
    %v342 = vmul.f32 %v325, %v329
    %v343 = vmul.f32 %v326, %v329
    %v344 = vmul.f32 %v327, %v329
    %v345 = vmul.f32 %v328, %v329
    %v346 = vperm.slane %v27, 1
    %v347 = vadd.f32 %v330, %v346
    %v348 = vadd.f32 %v331, %v346
    %v349 = vadd.f32 %v332, %v346
    %v350 = vadd.f32 %v333, %v346
    %v351 = vadd.f32 %v334, %v346
    %v352 = vadd.f32 %v335, %v346
    %v353 = vadd.f32 %v336, %v346
    %v354 = vadd.f32 %v337, %v346
    %v355 = vadd.f32 %v338, %v346
    %v356 = vadd.f32 %v339, %v346
    %v357 = vadd.f32 %v340, %v346
    %v358 = vadd.f32 %v341, %v346
    %v359 = vadd.f32 %v342, %v346
    %v360 = vadd.f32 %v343, %v346
    %v361 = vadd.f32 %v344, %v346
    %v362 = vadd.f32 %v345, %v346
    %v363 = vmax.f32 %v347, 0.0
    %v364 = vmax.f32 %v348, 0.0
    %v365 = vmax.f32 %v349, 0.0
    %v366 = vmax.f32 %v350, 0.0
    %v367 = vmax.f32 %v351, 0.0
    %v368 = vmax.f32 %v352, 0.0
    %v369 = vmax.f32 %v353, 0.0
    %v370 = vmax.f32 %v354, 0.0
    %v371 = vmax.f32 %v355, 0.0
    %v372 = vmax.f32 %v356, 0.0
    %v373 = vmax.f32 %v357, 0.0
    %v374 = vmax.f32 %v358, 0.0
    %v375 = vmax.f32 %v359, 0.0
    %v376 = vmax.f32 %v360, 0.0
    %v377 = vmax.f32 %v361, 0.0
    %v378 = vmax.f32 %v362, 0.0
    %395 = vst [vmem:[#allocation1] ss:$4 sm:$0xff] %v363
    %s396 = scalar_lea.vmem [#allocation1], 1
    %397 = vst [vmem:[%s396] ss:$4 sm:$0xff] %v364
    %s398 = scalar_lea.vmem [#allocation1], 2
    %399 = vst [vmem:[%s398] ss:$4 sm:$0xff] %v365
    %s400 = scalar_lea.vmem [#allocation1], 3
    %401 = vst [vmem:[%s400] ss:$4 sm:$0xff] %v366
    %s402 = scalar_lea.vmem [#allocation1], 32
    %403 = vst [vmem:[%s402] ss:$4 sm:$0xff] %v367
    %s404 = scalar_lea.vmem [#allocation1], 33
    %405 = vst [vmem:[%s404] ss:$4 sm:$0xff] %v368
    %s406 = scalar_lea.vmem [#allocation1], 34
    %407 = vst [vmem:[%s406] ss:$4 sm:$0xff] %v369
    %s408 = scalar_lea.vmem [#allocation1], 35
    %409 = vst [vmem:[%s408] ss:$4 sm:$0xff] %v370
    %v410 = vld.sshfl [vmem:[#allocation1] sm:$0xff pattern:$0x73625140]
    %v411 = vld.sshfl [vmem:[#allocation1 + $0x20] sm:$0xff pattern:$0x73625140]
    %412 = vst [vmem:[#allocation1] ss:$4 sm:$0xff] %v371
    %413 = vst [vmem:[%s396] ss:$4 sm:$0xff] %v372
    %414 = vst [vmem:[%s398] ss:$4 sm:$0xff] %v373
    %415 = vst [vmem:[%s400] ss:$4 sm:$0xff] %v374
    %416 = vst [vmem:[%s402] ss:$4 sm:$0xff] %v375
    %417 = vst [vmem:[%s404] ss:$4 sm:$0xff] %v376
    %418 = vst [vmem:[%s406] ss:$4 sm:$0xff] %v377
    %419 = vst [vmem:[%s408] ss:$4 sm:$0xff] %v378
    %v420 = vld.sshfl [vmem:[#allocation1] sm:$0xff pattern:$0x73625140]
    %v421 = vld.sshfl [vmem:[#allocation1 + $0x20] sm:$0xff pattern:$0x73625140]
    %vm426 = vcmask 261120
    %427 = vst.msk [vmem:[#allocation2 + $0x2] sm:$0xff] %vm426, %v410
    %428 = vst.msk [vmem:[#allocation2 + $0xa] sm:$0xff] %vm426, %v411
    %429 = vst.msk [vmem:[#allocation2 + $0x12] sm:$0xff] %vm426, %v420
    %430 = vst.msk [vmem:[#allocation2 + $0x1a] sm:$0xff] %vm426, %v421
    %v431 = vld [vmem:[#allocation2] sm:$0xff]
    %v432 = vld [vmem:[#allocation2 + $0x8] sm:$0xff]
    %v433 = vld [vmem:[#allocation2 + $0x10] sm:$0xff]
    %v434 = vld [vmem:[#allocation2 + $0x18] sm:$0xff]
    %v435 = vld [vmem:[%s2] sm:$0xff]
    %v436 = vld [vmem:[%s2 + $0x8] sm:$0xff]
    %v437 = vld [vmem:[%s2 + $0x10] sm:$0xff]
    %v438 = vld [vmem:[%s2 + $0x18] sm:$0xff]
    %v439 = vld [vmem:[#allocation2 + $0x2] sm:$0xff]
    %v440 = vld [vmem:[#allocation2 + $0xa] sm:$0xff]
    %v441 = vld [vmem:[#allocation2 + $0x12] sm:$0xff]
    %v442 = vld [vmem:[#allocation2 + $0x1a] sm:$0xff]
    %v443 = vld [vmem:[%s2 + $0x20] sm:$0xff]
    %v444 = vld [vmem:[%s2 + $0x28] sm:$0xff]
    %v445 = vld [vmem:[%s2 + $0x30] sm:$0xff]
    %v446 = vld [vmem:[%s2 + $0x38] sm:$0xff]
    %v448 = vsel %vm426, %v439, 0
    %v451 = vsel %vm426, %v440, 0
    %v454 = vsel %vm426, %v441, 0
    %v457 = vsel %vm426, %v442, 0
    %459 = vmatpush.msra.mxu0 0.0
    %460 = vmatpush.msra.mxu0 0.0
    %461 = vmatpush.msra.mxu0 0.0
    %462 = vmatpush.msra.mxu0 0.0
    %463 = vmatpush.msra.mxu0 0.0
    %464 = vmatpush.msra.mxu0 0.0
    %465 = vmatpush.msra.mxu0 0.0
    %466 = vmatpush.msra.mxu0 0.0
    %467 = vmatpush.msra.mxu0 0.0
    %468 = vmatpush.msra.mxu0 0.0
    %469 = vmatpush.msra.mxu0 0.0
    %470 = vmatpush.msra.mxu0 0.0
    %471 = vmatpush.msra.mxu0 %v446
    %472 = vmatpush.msra.mxu0 %v445
    %473 = vmatpush.msra.mxu0 %v444
    %474 = vmatpush.msra.mxu0 %v443
    %475 = vmatmul.f32.gmra.mxu0 %v448
    %v476 = vpop.f32.mrf.mxu0
    %v477 = vadd.f32 0.0, %v476
    %478 = vmatmul.f32.gmra.mxu0 %v451
    %v479 = vpop.f32.mrf.mxu0
    %v480 = vadd.f32 0.0, %v479
    %481 = vmatmul.f32.gmra.mxu0 %v454
    %v482 = vpop.f32.mrf.mxu0
    %v483 = vadd.f32 0.0, %v482
    %484 = vmatmul.f32.gmra.mxu0 %v457
    %v485 = vpop.f32.mrf.mxu0
    %v486 = vadd.f32 0.0, %v485
    %487 = vdwg.mxu0
    %v489 = vsel %vm426, %v431, 0
    %v492 = vsel %vm426, %v432, 0
    %v495 = vsel %vm426, %v433, 0
    %v498 = vsel %vm426, %v434, 0
    %500 = vmatpush.msra.mxu0 0.0
    %501 = vmatpush.msra.mxu0 0.0
    %502 = vmatpush.msra.mxu0 0.0
    %503 = vmatpush.msra.mxu0 0.0
    %504 = vmatpush.msra.mxu0 0.0
    %505 = vmatpush.msra.mxu0 0.0
    %506 = vmatpush.msra.mxu0 0.0
    %507 = vmatpush.msra.mxu0 0.0
    %508 = vmatpush.msra.mxu0 0.0
    %509 = vmatpush.msra.mxu0 0.0
    %510 = vmatpush.msra.mxu0 0.0
    %511 = vmatpush.msra.mxu0 0.0
    %512 = vmatpush.msra.mxu0 %v438
    %513 = vmatpush.msra.mxu0 %v437
    %514 = vmatpush.msra.mxu0 %v436
    %515 = vmatpush.msra.mxu0 %v435
    %516 = vmatmul.f32.gmra.mxu0 %v489
    %v517 = vpop.f32.mrf.mxu0
    %v518 = vadd.f32 %v477, %v517
    %519 = vmatmul.f32.gmra.mxu0 %v492
    %v520 = vpop.f32.mrf.mxu0
    %v521 = vadd.f32 %v480, %v520
    %522 = vmatmul.f32.gmra.mxu0 %v495
    %v523 = vpop.f32.mrf.mxu0
    %v524 = vadd.f32 %v483, %v523
    %525 = vmatmul.f32.gmra.mxu0 %v498
    %v526 = vpop.f32.mrf.mxu0
    %v527 = vadd.f32 %v486, %v526
    %528 = vdwg.mxu0
    %v529 = vld [vmem:[#allocation2 + $0x4] sm:$0xff]
    %v530 = vld [vmem:[#allocation2 + $0xc] sm:$0xff]
    %v531 = vld [vmem:[#allocation2 + $0x14] sm:$0xff]
    %v532 = vld [vmem:[#allocation2 + $0x1c] sm:$0xff]
    %v533 = vld [vmem:[%s2 + $0x40] sm:$0xff]
    %v534 = vld [vmem:[%s2 + $0x48] sm:$0xff]
    %v535 = vld [vmem:[%s2 + $0x50] sm:$0xff]
    %v536 = vld [vmem:[%s2 + $0x58] sm:$0xff]
    %v538 = vsel %vm426, %v529, 0
    %v541 = vsel %vm426, %v530, 0
    %v544 = vsel %vm426, %v531, 0
    %v547 = vsel %vm426, %v532, 0
    %549 = vmatpush.msra.mxu0 0.0
    %550 = vmatpush.msra.mxu0 0.0
    %551 = vmatpush.msra.mxu0 0.0
    %552 = vmatpush.msra.mxu0 0.0
    %553 = vmatpush.msra.mxu0 0.0
    %554 = vmatpush.msra.mxu0 0.0
    %555 = vmatpush.msra.mxu0 0.0
    %556 = vmatpush.msra.mxu0 0.0
    %557 = vmatpush.msra.mxu0 0.0
    %558 = vmatpush.msra.mxu0 0.0
    %559 = vmatpush.msra.mxu0 0.0
    %560 = vmatpush.msra.mxu0 0.0
    %561 = vmatpush.msra.mxu0 %v536
    %562 = vmatpush.msra.mxu0 %v535
    %563 = vmatpush.msra.mxu0 %v534
    %564 = vmatpush.msra.mxu0 %v533
    %565 = vmatmul.f32.gmra.mxu0 %v538
    %v566 = vpop.f32.mrf.mxu0
    %v567 = vadd.f32 0.0, %v566
    %568 = vmatmul.f32.gmra.mxu0 %v541
    %v569 = vpop.f32.mrf.mxu0
    %v570 = vadd.f32 0.0, %v569
    %571 = vmatmul.f32.gmra.mxu0 %v544
    %v572 = vpop.f32.mrf.mxu0
    %v573 = vadd.f32 0.0, %v572
    %574 = vmatmul.f32.gmra.mxu0 %v547
    %v575 = vpop.f32.mrf.mxu0
    %v576 = vadd.f32 0.0, %v575
    %577 = vdwg.mxu0
    %v578 = vadd.f32 %v518, %v567
    %v579 = vadd.f32 %v521, %v570
    %v580 = vadd.f32 %v524, %v573
    %v581 = vadd.f32 %v527, %v576
    %v586 = vrot.slane %v578, 4
    %v587 = vrot.slane %v579, 4
    %v588 = vrot.slane %v580, 4
    %v589 = vrot.slane %v581, 4
    %v594 = vperm.slane %v27, 2
    %v595 = vmul.f32 %v578, %v594
    %v596 = vmul.f32 %v586, %v594
    %v597 = vmul.f32 %v579, %v594
    %v598 = vmul.f32 %v587, %v594
    %v599 = vmul.f32 %v580, %v594
    %v600 = vmul.f32 %v588, %v594
    %v601 = vmul.f32 %v581, %v594
    %v602 = vmul.f32 %v589, %v594
    %v603 = vperm.slane %v27, 3
    %v604 = vadd.f32 %v595, %v603
    %v605 = vadd.f32 %v596, %v603
    %v606 = vadd.f32 %v597, %v603
    %v607 = vadd.f32 %v598, %v603
    %v608 = vadd.f32 %v599, %v603
    %v609 = vadd.f32 %v600, %v603
    %v610 = vadd.f32 %v601, %v603
    %v611 = vadd.f32 %v602, %v603
    %v612 = vmax.f32 %v604, 0.0
    %v613 = vmax.f32 %v605, 0.0
    %v614 = vmax.f32 %v606, 0.0
    %v615 = vmax.f32 %v607, 0.0
    %v616 = vmax.f32 %v608, 0.0
    %v617 = vmax.f32 %v609, 0.0
    %v618 = vmax.f32 %v610, 0.0
    %v619 = vmax.f32 %v611, 0.0
    %v628 = vrot.slane %v612, 6
    %v629 = vrot.slane %v628, 4
    %v630 = vrot.slane %v613, 6
    %v631 = vrot.slane %v630, 4
    %v632 = vrot.slane %v614, 6
    %v633 = vrot.slane %v632, 4
    %v634 = vrot.slane %v615, 6
    %v635 = vrot.slane %v634, 4
    %v636 = vrot.slane %v616, 6
    %v637 = vrot.slane %v636, 4
    %v638 = vrot.slane %v617, 6
    %v639 = vrot.slane %v638, 4
    %v640 = vrot.slane %v618, 6
    %v641 = vrot.slane %v640, 4
    %v642 = vrot.slane %v619, 6
    %v643 = vrot.slane %v642, 4
    %v652 = vmax.f32 %v612, %v629
    %v653 = vmax.f32 %v613, %v631
    %v654 = vmax.f32 %v614, %v633
    %v655 = vmax.f32 %v615, %v635
    %v656 = vmax.f32 %v616, %v637
    %v657 = vmax.f32 %v617, %v639
    %v658 = vmax.f32 %v618, %v641
    %v659 = vmax.f32 %v619, %v643
    %668 = vst [vmem:[#allocation1] ss:$4 sm:$0xff] %v652
    %s669 = scalar_lea.vmem [#allocation1], 1
    %670 = vst [vmem:[%s669] ss:$4 sm:$0xff] %v653
    %s671 = scalar_lea.vmem [#allocation1], 2
    %672 = vst [vmem:[%s671] ss:$4 sm:$0xff] %v654
    %s673 = scalar_lea.vmem [#allocation1], 3
    %674 = vst [vmem:[%s673] ss:$4 sm:$0xff] %v655
    %s675 = scalar_lea.vmem [#allocation1], 32
    %676 = vst [vmem:[%s675] ss:$4 sm:$0xff] %v656
    %s677 = scalar_lea.vmem [#allocation1], 33
    %678 = vst [vmem:[%s677] ss:$4 sm:$0xff] %v657
    %s679 = scalar_lea.vmem [#allocation1], 34
    %680 = vst [vmem:[%s679] ss:$4 sm:$0xff] %v658
    %s681 = scalar_lea.vmem [#allocation1], 35
    %682 = vst [vmem:[%s681] ss:$4 sm:$0xff] %v659
    %v683 = vld.sshfl [vmem:[#allocation1] sm:$0xff pattern:$0x73625140]
    %v684 = vld.sshfl [vmem:[#allocation1 + $0x20] sm:$0xff pattern:$0x73625140]
    %687 = vst.msk [vmem:[#allocation3 + $0x2] sm:$0xff] %vm426, %v683
    %688 = vst.msk [vmem:[#allocation3 + $0xa] sm:$0xff] %vm426, %v684
    %v689 = vld [vmem:[#allocation3] sm:$0xff]
    %v690 = vld [vmem:[#allocation3 + $0x8] sm:$0xff]
    %v691 = vld [vmem:[%s3] sm:$0xff]
    %v692 = vld [vmem:[%s3 + $0x8] sm:$0xff]
    %v693 = vld [vmem:[%s3 + $0x10] sm:$0xff]
    %v694 = vld [vmem:[%s3 + $0x18] sm:$0xff]
    %v695 = vld [vmem:[#allocation3 + $0x2] sm:$0xff]
    %v696 = vld [vmem:[#allocation3 + $0xa] sm:$0xff]
    %v697 = vld [vmem:[%s3 + $0x20] sm:$0xff]
    %v698 = vld [vmem:[%s3 + $0x28] sm:$0xff]
    %v699 = vld [vmem:[%s3 + $0x30] sm:$0xff]
    %v700 = vld [vmem:[%s3 + $0x38] sm:$0xff]
    %v702 = vsel %vm426, %v695, 0
    %v705 = vsel %vm426, %v696, 0
    %707 = vmatpush.msra.mxu0 0.0
    %708 = vmatpush.msra.mxu0 0.0
    %709 = vmatpush.msra.mxu0 0.0
    %710 = vmatpush.msra.mxu0 0.0
    %711 = vmatpush.msra.mxu0 0.0
    %712 = vmatpush.msra.mxu0 0.0
    %713 = vmatpush.msra.mxu0 0.0
    %714 = vmatpush.msra.mxu0 0.0
    %715 = vmatpush.msra.mxu0 0.0
    %716 = vmatpush.msra.mxu0 0.0
    %717 = vmatpush.msra.mxu0 0.0
    %718 = vmatpush.msra.mxu0 0.0
    %719 = vmatpush.msra.mxu0 %v700
    %720 = vmatpush.msra.mxu0 %v699
    %721 = vmatpush.msra.mxu0 %v698
    %722 = vmatpush.msra.mxu0 %v697
    %723 = vmatmul.f32.gmra.mxu0 %v702
    %v724 = vpop.f32.mrf.mxu0
    %v725 = vadd.f32 0.0, %v724
    %726 = vmatmul.f32.gmra.mxu0 %v705
    %v727 = vpop.f32.mrf.mxu0
    %v728 = vadd.f32 0.0, %v727
    %729 = vdwg.mxu0
    %v731 = vsel %vm426, %v689, 0
    %v734 = vsel %vm426, %v690, 0
    %736 = vmatpush.msra.mxu0 0.0
    %737 = vmatpush.msra.mxu0 0.0
    %738 = vmatpush.msra.mxu0 0.0
    %739 = vmatpush.msra.mxu0 0.0
    %740 = vmatpush.msra.mxu0 0.0
    %741 = vmatpush.msra.mxu0 0.0
    %742 = vmatpush.msra.mxu0 0.0
    %743 = vmatpush.msra.mxu0 0.0
    %744 = vmatpush.msra.mxu0 0.0
    %745 = vmatpush.msra.mxu0 0.0
    %746 = vmatpush.msra.mxu0 0.0
    %747 = vmatpush.msra.mxu0 0.0
    %748 = vmatpush.msra.mxu0 %v694
    %749 = vmatpush.msra.mxu0 %v693
    %750 = vmatpush.msra.mxu0 %v692
    %751 = vmatpush.msra.mxu0 %v691
    %752 = vmatmul.f32.gmra.mxu0 %v731
    %v753 = vpop.f32.mrf.mxu0
    %v754 = vadd.f32 %v725, %v753
    %755 = vmatmul.f32.gmra.mxu0 %v734
    %v756 = vpop.f32.mrf.mxu0
    %v757 = vadd.f32 %v728, %v756
    %758 = vdwg.mxu0
    %v759 = vld [vmem:[#allocation3 + $0x4] sm:$0xff]
    %v760 = vld [vmem:[#allocation3 + $0xc] sm:$0xff]
    %v761 = vld [vmem:[%s3 + $0x40] sm:$0xff]
    %v762 = vld [vmem:[%s3 + $0x48] sm:$0xff]
    %v763 = vld [vmem:[%s3 + $0x50] sm:$0xff]
    %v764 = vld [vmem:[%s3 + $0x58] sm:$0xff]
    %v766 = vsel %vm426, %v759, 0
    %v769 = vsel %vm426, %v760, 0
    %771 = vmatpush.msra.mxu0 0.0
    %772 = vmatpush.msra.mxu0 0.0
    %773 = vmatpush.msra.mxu0 0.0
    %774 = vmatpush.msra.mxu0 0.0
    %775 = vmatpush.msra.mxu0 0.0
    %776 = vmatpush.msra.mxu0 0.0
    %777 = vmatpush.msra.mxu0 0.0
    %778 = vmatpush.msra.mxu0 0.0
    %779 = vmatpush.msra.mxu0 0.0
    %780 = vmatpush.msra.mxu0 0.0
    %781 = vmatpush.msra.mxu0 0.0
    %782 = vmatpush.msra.mxu0 0.0
    %783 = vmatpush.msra.mxu0 %v764
    %784 = vmatpush.msra.mxu0 %v763
    %785 = vmatpush.msra.mxu0 %v762
    %786 = vmatpush.msra.mxu0 %v761
    %787 = vmatmul.f32.gmra.mxu0 %v766
    %v788 = vpop.f32.mrf.mxu0
    %v789 = vadd.f32 0.0, %v788
    %790 = vmatmul.f32.gmra.mxu0 %v769
    %v791 = vpop.f32.mrf.mxu0
    %v792 = vadd.f32 0.0, %v791
    %793 = vdwg.mxu0
    %v794 = vadd.f32 %v754, %v789
    %v795 = vadd.f32 %v757, %v792
    %v796 = vperm.slane %v27, 4
    %v797 = vmul.f32 %v794, %v796
    %v798 = vmul.f32 %v795, %v796
    %v799 = vperm.slane %v27, 5
    %v800 = vadd.f32 %v797, %v799
    %v801 = vadd.f32 %v798, %v799
    %v802 = vmax.f32 %v800, 0.0
    %v803 = vmax.f32 %v801, 0.0
    %vm804 = vcmask 523264
    %805 = vst.msk [vmem:[#allocation4 + $0x2] sm:$0xff] %vm804, %v802
    %806 = vst.msk [vmem:[#allocation4 + $0xa] sm:$0xff] %vm804, %v803
    %v807 = vld [vmem:[#allocation4] sm:$0xff]
    %v808 = vld [vmem:[#allocation4 + $0x8] sm:$0xff]
    %v809 = vld [vmem:[%s4] sm:$0xff]
    %v810 = vld [vmem:[%s4 + $0x8] sm:$0xff]
    %v811 = vld [vmem:[%s4 + $0x10] sm:$0xff]
    %v812 = vld [vmem:[%s4 + $0x18] sm:$0xff]
    %v813 = vld [vmem:[%s4 + $0x20] sm:$0xff]
    %v814 = vld [vmem:[%s4 + $0x28] sm:$0xff]
    %v815 = vld [vmem:[%s4 + $0x30] sm:$0xff]
    %v816 = vld [vmem:[%s4 + $0x38] sm:$0xff]
    %v817 = vld [vmem:[#allocation4 + $0x2] sm:$0xff]
    %v818 = vld [vmem:[#allocation4 + $0xa] sm:$0xff]
    %v819 = vld [vmem:[%s4 + $0x40] sm:$0xff]
    %v820 = vld [vmem:[%s4 + $0x48] sm:$0xff]
    %v821 = vld [vmem:[%s4 + $0x50] sm:$0xff]
    %v822 = vld [vmem:[%s4 + $0x58] sm:$0xff]
    %v823 = vld [vmem:[%s4 + $0x60] sm:$0xff]
    %v824 = vld [vmem:[%s4 + $0x68] sm:$0xff]
    %v825 = vld [vmem:[%s4 + $0x70] sm:$0xff]
    %v826 = vld [vmem:[%s4 + $0x78] sm:$0xff]
    %v828 = vsel %vm804, %v817, 0
    %v831 = vsel %vm804, %v818, 0
    %833 = vmatpush.msra.mxu0 0.0
    %834 = vmatpush.msra.mxu0 0.0
    %835 = vmatpush.msra.mxu0 0.0
    %836 = vmatpush.msra.mxu0 0.0
    %837 = vmatpush.msra.mxu0 0.0
    %838 = vmatpush.msra.mxu0 0.0
    %839 = vmatpush.msra.mxu0 0.0
    %840 = vmatpush.msra.mxu0 0.0
    %841 = vmatpush.msra.mxu0 %v826
    %842 = vmatpush.msra.mxu0 %v825
    %843 = vmatpush.msra.mxu0 %v824
    %844 = vmatpush.msra.mxu0 %v823
    %845 = vmatpush.msra.mxu0 %v822
    %846 = vmatpush.msra.mxu0 %v821
    %847 = vmatpush.msra.mxu0 %v820
    %848 = vmatpush.msra.mxu0 %v819
    %849 = vmatmul.f32.gmra.mxu0 %v828
    %v850 = vpop.f32.mrf.mxu0
    %v851 = vadd.f32 0.0, %v850
    %852 = vmatmul.f32.gmra.mxu0 %v831
    %v853 = vpop.f32.mrf.mxu0
    %v854 = vadd.f32 0.0, %v853
    %855 = vdwg.mxu0
    %v857 = vsel %vm804, %v807, 0
    %v860 = vsel %vm804, %v808, 0
    %862 = vmatpush.msra.mxu0 0.0
    %863 = vmatpush.msra.mxu0 0.0
    %864 = vmatpush.msra.mxu0 0.0
    %865 = vmatpush.msra.mxu0 0.0
    %866 = vmatpush.msra.mxu0 0.0
    %867 = vmatpush.msra.mxu0 0.0
    %868 = vmatpush.msra.mxu0 0.0
    %869 = vmatpush.msra.mxu0 0.0
    %870 = vmatpush.msra.mxu0 %v816
    %871 = vmatpush.msra.mxu0 %v815
    %872 = vmatpush.msra.mxu0 %v814
    %873 = vmatpush.msra.mxu0 %v813
    %874 = vmatpush.msra.mxu0 %v812
    %875 = vmatpush.msra.mxu0 %v811
    %876 = vmatpush.msra.mxu0 %v810
    %877 = vmatpush.msra.mxu0 %v809
    %878 = vmatmul.f32.gmra.mxu0 %v857
    %v879 = vpop.f32.mrf.mxu0
    %v880 = vadd.f32 %v851, %v879
    %881 = vmatmul.f32.gmra.mxu0 %v860
    %v882 = vpop.f32.mrf.mxu0
    %v883 = vadd.f32 %v854, %v882
    %884 = vdwg.mxu0
    %v885 = vld [vmem:[#allocation4 + $0x4] sm:$0xff]
    %v886 = vld [vmem:[#allocation4 + $0xc] sm:$0xff]
    %v887 = vld [vmem:[%s4 + $0x80] sm:$0xff]
    %v888 = vld [vmem:[%s4 + $0x88] sm:$0xff]
    %v889 = vld [vmem:[%s4 + $0x90] sm:$0xff]
    %v890 = vld [vmem:[%s4 + $0x98] sm:$0xff]
    %v891 = vld [vmem:[%s4 + $0xa0] sm:$0xff]
    %v892 = vld [vmem:[%s4 + $0xa8] sm:$0xff]
    %v893 = vld [vmem:[%s4 + $0xb0] sm:$0xff]
    %v894 = vld [vmem:[%s4 + $0xb8] sm:$0xff]
    %v896 = vsel %vm804, %v885, 0
    %v899 = vsel %vm804, %v886, 0
    %901 = vmatpush.msra.mxu0 0.0
    %902 = vmatpush.msra.mxu0 0.0
    %903 = vmatpush.msra.mxu0 0.0
    %904 = vmatpush.msra.mxu0 0.0
    %905 = vmatpush.msra.mxu0 0.0
    %906 = vmatpush.msra.mxu0 0.0
    %907 = vmatpush.msra.mxu0 0.0
    %908 = vmatpush.msra.mxu0 0.0
    %909 = vmatpush.msra.mxu0 %v894
    %910 = vmatpush.msra.mxu0 %v893
    %911 = vmatpush.msra.mxu0 %v892
    %912 = vmatpush.msra.mxu0 %v891
    %913 = vmatpush.msra.mxu0 %v890
    %914 = vmatpush.msra.mxu0 %v889
    %915 = vmatpush.msra.mxu0 %v888
    %916 = vmatpush.msra.mxu0 %v887
    %917 = vmatmul.f32.gmra.mxu0 %v896
    %v918 = vpop.f32.mrf.mxu0
    %v919 = vadd.f32 0.0, %v918
    %920 = vmatmul.f32.gmra.mxu0 %v899
    %v921 = vpop.f32.mrf.mxu0
    %v922 = vadd.f32 0.0, %v921
    %923 = vdwg.mxu0
    %v924 = vadd.f32 %v880, %v919
    %v925 = vadd.f32 %v883, %v922
    %v928 = vrot.slane %v924, 4
    %v929 = vrot.slane %v925, 4
    %v932 = vperm.slane %v27, 6
    %v933 = vmul.f32 %v924, %v932
    %v934 = vmul.f32 %v928, %v932
    %v935 = vmul.f32 %v925, %v932
    %v936 = vmul.f32 %v929, %v932
    %v937 = vperm.slane %v27, 7
    %v938 = vadd.f32 %v933, %v937
    %v939 = vadd.f32 %v934, %v937
    %v940 = vadd.f32 %v935, %v937
    %v941 = vadd.f32 %v936, %v937
    %v942 = vmax.f32 %v938, 0.0
    %v943 = vmax.f32 %v939, 0.0
    %v944 = vmax.f32 %v940, 0.0
    %v945 = vmax.f32 %v941, 0.0
    %v950 = vrot.slane %v942, 6
    %v951 = vrot.slane %v950, 4
    %v952 = vrot.slane %v943, 6
    %v953 = vrot.slane %v952, 4
    %v954 = vrot.slane %v944, 6
    %v955 = vrot.slane %v954, 4
    %v956 = vrot.slane %v945, 6
    %v957 = vrot.slane %v956, 4
    %v962 = vmax.f32 %v942, %v951
    %v963 = vmax.f32 %v943, %v953
    %v964 = vmax.f32 %v944, %v955
    %v965 = vmax.f32 %v945, %v957
    %v966 = vsel %vm34, %v962, 0.0
    %v967 = vsel %vm34, %v963, 0.0
    %v968 = vadd.f32 %v966, %v967
    %v969 = vsel %vm34, %v964, 0.0
    %v970 = vadd.f32 %v968, %v969
    %v971 = vsel %vm34, %v965, 0.0
    %v972 = vadd.f32 %v970, %v971
    %v973 = vmul.f32 %v972, 0.25
    %v974 = vld [vmem:[%s5] sm:$0xff]
    %v975 = vld [vmem:[%s5 + $0x8] sm:$0xff]
    %v976 = vld [vmem:[%s5 + $0x10] sm:$0xff]
    %v977 = vld [vmem:[%s5 + $0x18] sm:$0xff]
    %v978 = vld [vmem:[%s5 + $0x20] sm:$0xff]
    %v979 = vld [vmem:[%s5 + $0x28] sm:$0xff]
    %v980 = vld [vmem:[%s5 + $0x30] sm:$0xff]
    %v981 = vld [vmem:[%s5 + $0x38] sm:$0xff]
    %v982 = vperm.slane %v28, 0
    %v984 = vsel %vm804, %v973, 0
    %986 = vmatpush.msra.mxu0 0.0
    %987 = vmatpush.msra.mxu0 0.0
    %988 = vmatpush.msra.mxu0 0.0
    %989 = vmatpush.msra.mxu0 0.0
    %990 = vmatpush.msra.mxu0 0.0
    %991 = vmatpush.msra.mxu0 0.0
    %992 = vmatpush.msra.mxu0 0.0
    %993 = vmatpush.msra.mxu0 0.0
    %994 = vmatpush.msra.mxu0 %v981
    %995 = vmatpush.msra.mxu0 %v980
    %996 = vmatpush.msra.mxu0 %v979
    %997 = vmatpush.msra.mxu0 %v978
    %998 = vmatpush.msra.mxu0 %v977
    %999 = vmatpush.msra.mxu0 %v976
    %1000 = vmatpush.msra.mxu0 %v975
    %1001 = vmatpush.msra.mxu0 %v974
    %1002 = vmatmul.f32.gmra.mxu0 %v984
    %v1003 = vpop.f32.mrf.mxu0
    %v1004 = vadd.f32 %v982, %v1003
    %1005 = vdwg.mxu0
    %v1006 = vmax.f32 %v1004, 0.0
    %v1007 = vld [vmem:[%s6] sm:$0xff]
    %v1008 = vld [vmem:[%s6 + $0x8] sm:$0xff]
    %v1009 = vld [vmem:[%s6 + $0x10] sm:$0xff]
    %v1010 = vld [vmem:[%s6 + $0x18] sm:$0xff]
    %v1011 = vperm.slane %v28, 1
    %v1013 = vsel %vm426, %v1006, 0
    %1015 = vmatpush.msra.mxu0 0.0
    %1016 = vmatpush.msra.mxu0 0.0
    %1017 = vmatpush.msra.mxu0 0.0
    %1018 = vmatpush.msra.mxu0 0.0
    %1019 = vmatpush.msra.mxu0 0.0
    %1020 = vmatpush.msra.mxu0 0.0
    %1021 = vmatpush.msra.mxu0 0.0
    %1022 = vmatpush.msra.mxu0 0.0
    %1023 = vmatpush.msra.mxu0 0.0
    %1024 = vmatpush.msra.mxu0 0.0
    %1025 = vmatpush.msra.mxu0 0.0
    %1026 = vmatpush.msra.mxu0 0.0
    %1027 = vmatpush.msra.mxu0 %v1010
    %1028 = vmatpush.msra.mxu0 %v1009
    %1029 = vmatpush.msra.mxu0 %v1008
    %1030 = vmatpush.msra.mxu0 %v1007
    %1031 = vmatmul.f32.gmra.mxu0 %v1013
    %v1032 = vpop.f32.mrf.mxu0
    %v1033 = vadd.f32 %v1011, %v1032
    %1034 = vdwg.mxu0
    %1035 = vst [vmem:[#allocation5] sm:$0x3] %v1033
    // Predicated region
    $region30: #{tpu_custom_call.1} parent=1 // pred_check
      _
    $region31: #{tpu_custom_call.1} parent=1 // pred_check_branch
      %1037 = sbr.rel (0) target = $region33
    $region32: #{tpu_custom_call.1} parent=1 // pred_region
      %1039 = vsyncadd [#allocation6], 0
      %s1041 = sshll.u32 [#allocation5], 4
      %s1042 = int_to_ptr.vmem [resolvable:$true] %s1041
      %s1043 = sshll.u32 %s7, 4
      %s1044 = int_to_ptr.hbm [resolvable:$true] %s1043
      %1046 = dma.vmem_to_hbm [thread:$0]  %s1042, 32, %s1044, [#allocation6]
    $region33: #{tpu_custom_call.1} parent=1 // pred_fallthru
      _
    // Predicated region
    $region34: #{tpu_custom_call.1} parent=1 // pred_check
      _
    $region35: #{tpu_custom_call.1} parent=1 // pred_check_branch
      %1048 = sbr.rel (0) target = $region37
    $region36: #{tpu_custom_call.1} parent=1 // pred_region
      %1050 = dma.done [#allocation6], 32
    $region37: #{tpu_custom_call.1} parent=1 // pred_fallthru
      _
    %1051 = vsyncpa [#allocation6], 1

</llo_original>
